<compile_context>
chip_gen: v5e
topology: v5e:2x2
jax: 0.10.0
libtpu: 0.0.40
codegen_flags: <defaults>
</compile_context>

<pallas_src>
import math
import functools

import jax
import jax.numpy as jnp
from jax import lax
from jax.experimental import pallas as pl
from jax.experimental.pallas import tpu as pltpu


def _layer_norm(x, w, b, eps=1e-5):
    mean = jnp.mean(x, axis=-1, keepdims=True)
    var = jnp.mean((x - mean) ** 2, axis=-1, keepdims=True)
    return (x - mean) * jax.lax.rsqrt(var + eps) * w + b


def _gelu_exact(x):
    # nn.GELU() default (erf-based, exact)
    return 0.5 * x * (1.0 + jax.lax.erf(x * (1.0 / math.sqrt(2.0))))


def transformer_block_kernel(
    x_ref,
    ln1w_ref, ln1b_ref,
    wqkv_ref, bqkv_ref,
    wo_ref, bo_ref,
    ln2w_ref, ln2b_ref,
    w1_ref, b1_ref, w2_ref, b2_ref,
    o_ref,
    attn_scratch,
    *, num_heads, mlp_chunk, compute_dtype,
):
    x = x_ref[...]                          # (S, D) f32 slab for this batch element
    S, D = x.shape
    dh = D // num_heads
    scale = 1.0 / math.sqrt(dh)
    cdt = compute_dtype

    # --- LayerNorm 1 (f32) ---
    xn = _layer_norm(x, ln1w_ref[...], ln1b_ref[...])

    # --- Fused QKV projection: single (S, D) x (D, 3D) MXU pass ---
    qkv = jnp.dot(xn.astype(cdt), wqkv_ref[...],
                  preferred_element_type=jnp.float32) + bqkv_ref[...]
    q = qkv[:, 0 * D:1 * D] * scale         # fold 1/sqrt(dh) into q (cheaper than on (S,S))
    k = qkv[:, 1 * D:2 * D]
    v = qkv[:, 2 * D:3 * D]

    # --- Multi-head self-attention; heads write into a resident (S, D) scratch slab ---
    for h in range(num_heads):              # static unrolled loop over heads
        qh = q[:, h * dh:(h + 1) * dh].astype(cdt)
        kh = k[:, h * dh:(h + 1) * dh].astype(cdt)
        vh = v[:, h * dh:(h + 1) * dh].astype(cdt)
        # contracting dim 1 on both operands -> MXU directly, no XLU transpose of kh
        s = lax.dot_general(qh, kh, (((1,), (1,)), ((), ())),
                            preferred_element_type=jnp.float32)       # (S, S)
        s = s - jnp.max(s, axis=-1, keepdims=True)
        p = jnp.exp(s)
        inv = pl.reciprocal(jnp.sum(p, axis=-1, keepdims=True), approx=True)
        p = (p * inv).astype(cdt)
        ctx = jnp.dot(p, vh, preferred_element_type=jnp.float32)      # (S, dh)
        attn_scratch[:, h * dh:(h + 1) * dh] = ctx.astype(attn_scratch.dtype)

    attn = jnp.dot(attn_scratch[...], wo_ref[...],
                   preferred_element_type=jnp.float32) + bo_ref[...]
    # TODO(synk): attention/output dropout omitted (inference / eval mode).

    # --- residual 1 ---
    x1 = x + attn

    # --- LayerNorm 2 + MLP (chunked over mlp_dim to bound the hidden intermediate) ---
    x2 = _layer_norm(x1, ln2w_ref[...], ln2b_ref[...]).astype(cdt)
    mlp_dim = w1_ref.shape[1]
    h2 = jnp.zeros((S, D), jnp.float32)
    for c in range(0, mlp_dim, mlp_chunk):  # static loop; chunk divides mlp_dim
        w1_c = w1_ref[:, c:c + mlp_chunk]
        b1_c = b1_ref[:, c:c + mlp_chunk]
        w2_c = w2_ref[c:c + mlp_chunk, :]
        h1 = jnp.dot(x2, w1_c, preferred_element_type=jnp.float32) + b1_c
        h1 = _gelu_exact(h1).astype(cdt)
        h2 = h2 + jnp.dot(h1, w2_c, preferred_element_type=jnp.float32)
    h2 = h2 + b2_ref[...]

    # --- residual 2 ---
    o_ref[...] = (x1 + h2).astype(o_ref.dtype)


def transformer_block(x, params, *, num_heads,
                      compute_dtype=jnp.bfloat16, mlp_chunk=512):
    B, S, D = x.shape
    mlp_dim = params["w1"].shape[1]
    mlp_chunk = min(mlp_chunk, mlp_dim)
    assert mlp_dim % mlp_chunk == 0, "mlp_chunk must divide mlp_dim"
    assert D % num_heads == 0

    wdt = compute_dtype
    # Fuse Q|K|V weights/biases at the wrapper level; cast weights to the MXU compute dtype.
    wqkv = jnp.concatenate([params["wq"], params["wk"], params["wv"]], axis=1).astype(wdt)
    bqkv = jnp.concatenate([params["bq"], params["bk"], params["bv"]], axis=1)  # f32
    wo = params["wo"].astype(wdt)
    w1 = params["w1"].astype(wdt)
    w2 = params["w2"].astype(wdt)

    args = (
        x,
        params["ln1_w"], params["ln1_b"],
        wqkv, bqkv,
        wo, params["bo"],
        params["ln2_w"], params["ln2_b"],
        w1, params["b1"], w2, params["b2"],
    )

    def full_spec(a):
        shape = a.shape
        return pl.BlockSpec(shape, lambda b, _s=shape: (0,) * len(_s))

    in_specs = [pl.BlockSpec((None, S, D), lambda b: (b, 0, 0))]  # x: squeezed batch dim
    in_specs += [full_spec(a) for a in args[1:]]

    # Advisory cost estimate so XLA schedules surrounding ops (e.g. next-layer prefetch) well.
    dh = D // num_heads
    flops = B * (8 * S * D * D + 4 * S * S * D + 4 * S * D * mlp_dim)
    transcendentals = B * S * (num_heads * S + mlp_dim)
    weight_bytes = sum(int(a.size) * a.dtype.itemsize for a in args[1:])
    bytes_accessed = 2 * B * S * D * x.dtype.itemsize + weight_bytes
    cost = pl.CostEstimate(flops=flops, transcendentals=transcendentals,
                           bytes_accessed=bytes_accessed)

    kernel = functools.partial(
        transformer_block_kernel,
        num_heads=num_heads, mlp_chunk=mlp_chunk, compute_dtype=compute_dtype)

    return pl.pallas_call(
        kernel,
        out_shape=jax.ShapeDtypeStruct((B, S, D), x.dtype),
        grid=(B,),
        in_specs=in_specs,
        out_specs=pl.BlockSpec((None, S, D), lambda b: (b, 0, 0)),
        scratch_shapes=[pltpu.VMEM((S, D), compute_dtype)],   # per-head context slab
        compiler_params=pltpu.CompilerParams(
            dimension_semantics=("parallel",),               # megacore on v7x
            vmem_limit_bytes=32 * 1024 * 1024),
        cost_estimate=cost,
    )(*args)


def reference_block(x, p, *, num_heads):
    """Pure-JAX f32 reference mirroring the PyTorch forward (eval mode)."""
    B, S, D = x.shape
    dh = D // num_heads

    xn = _layer_norm(x, p["ln1_w"][0], p["ln1_b"][0])
    q = xn @ p["wq"] + p["bq"][0]
    k = xn @ p["wk"] + p["bk"][0]
    v = xn @ p["wv"] + p["bv"][0]
    q = q.reshape(B, S, num_heads, dh).transpose(0, 2, 1, 3)
    k = k.reshape(B, S, num_heads, dh).transpose(0, 2, 1, 3)
    v = v.reshape(B, S, num_heads, dh).transpose(0, 2, 1, 3)
    s = jnp.einsum("bhqd,bhkd->bhqk", q, k) / math.sqrt(dh)
    p_attn = jax.nn.softmax(s, axis=-1)
    o = jnp.einsum("bhqk,bhkd->bhqd", p_attn, v)
    o = o.transpose(0, 2, 1, 3).reshape(B, S, D)
    o = o @ p["wo"] + p["bo"][0]
    x1 = x + o
    x2 = _layer_norm(x1, p["ln2_w"][0], p["ln2_b"][0])
    h = _gelu_exact(x2 @ p["w1"] + p["b1"][0])
    h = h @ p["w2"] + p["b2"][0]
    return x1 + h


def make_params(key, input_dim, mlp_dim):
    keys = jax.random.split(key, 8)
    w = lambda k, shp: (0.02 * jax.random.normal(k, shp)).astype(jnp.float32)
    return {
        "ln1_w": jnp.ones((1, input_dim), jnp.float32),
        "ln1_b": jnp.zeros((1, input_dim), jnp.float32),
        "wq": w(keys[0], (input_dim, input_dim)),
        "bq": jnp.zeros((1, input_dim), jnp.float32),
        "wk": w(keys[1], (input_dim, input_dim)),
        "bk": jnp.zeros((1, input_dim), jnp.float32),
        "wv": w(keys[2], (input_dim, input_dim)),
        "bv": jnp.zeros((1, input_dim), jnp.float32),
        "wo": w(keys[3], (input_dim, input_dim)),
        "bo": jnp.zeros((1, input_dim), jnp.float32),
        "ln2_w": jnp.ones((1, input_dim), jnp.float32),
        "ln2_b": jnp.zeros((1, input_dim), jnp.float32),
        "w1": w(keys[4], (input_dim, mlp_dim)),
        "b1": (0.02 * jax.random.normal(keys[5], (1, mlp_dim))).astype(jnp.float32),
        "w2": w(keys[6], (mlp_dim, input_dim)),
        "b2": (0.02 * jax.random.normal(keys[7], (1, input_dim))).astype(jnp.float32),
    }


if __name__ == "__main__":
    # Small but lane-dense demo shapes: D, mlp_dim multiples of 128, S multiple of 16.
    B, S, D = 2, 16, 128
    num_heads = 4
    mlp_dim = 256

    key = jax.random.PRNGKey(0)
    kx, kp = jax.random.split(key)
    x = jax.random.normal(kx, (B, S, D), dtype=jnp.float32)
    params = make_params(kp, D, mlp_dim)

    ref = reference_block(x, params, num_heads=num_heads)

    # f32 compute path: tight structural check of the fused kernel.
    out_f32 = jax.block_until_ready(
        transformer_block(x, params, num_heads=num_heads, compute_dtype=jnp.float32))
    assert out_f32.shape == (B, S, D)
    err_f32 = float(jnp.max(jnp.abs(out_f32 - ref)))
    assert err_f32 < 5e-3, f"f32 mismatch vs reference: {err_f32}"

    # bf16 MXU path (default, higher throughput): looser tolerance.
    out_bf16 = jax.block_until_ready(
        transformer_block(x, params, num_heads=num_heads, compute_dtype=jnp.bfloat16))
    assert out_bf16.shape == (B, S, D)
    err_bf16 = float(jnp.max(jnp.abs(out_bf16 - ref)))
    assert err_bf16 < 5e-2, f"bf16 mismatch vs reference: {err_bf16}"

    print("KERNEL_OK")
</pallas_src>

<mosaic_0001>
module attributes {stable_mosaic.version = 11 : i64} {
  func.func @transformer_block_kernel(%arg0: i32, %arg1: memref<1x16x128xf32, #tpu.memory_space<vmem>>, %arg2: memref<1x128xf32, #tpu.memory_space<vmem>>, %arg3: memref<1x128xf32, #tpu.memory_space<vmem>>, %arg4: memref<128x384xf32, #tpu.memory_space<vmem>>, %arg5: memref<1x384xf32, #tpu.memory_space<vmem>>, %arg6: memref<128x128xf32, #tpu.memory_space<vmem>>, %arg7: memref<1x128xf32, #tpu.memory_space<vmem>>, %arg8: memref<1x128xf32, #tpu.memory_space<vmem>>, %arg9: memref<1x128xf32, #tpu.memory_space<vmem>>, %arg10: memref<128x256xf32, #tpu.memory_space<vmem>>, %arg11: memref<1x256xf32, #tpu.memory_space<vmem>>, %arg12: memref<256x128xf32, #tpu.memory_space<vmem>>, %arg13: memref<1x128xf32, #tpu.memory_space<vmem>>, %arg14: memref<1x16x128xf32, #tpu.memory_space<vmem>>, %arg15: memref<16x128xf32, #tpu.memory_space<vmem>>) attributes {dimension_semantics = [#tpu.dimension_semantics<parallel>], iteration_bounds = array<i64: 2>, scalar_prefetch = 0 : i64, scratch_operands = 1 : i64, tpu.core_type = #tpu.core_type<tc>, window_params = [{transform_indices = @transform_0, window_bounds = array<i64: 1, 16, 128>}, {pipeline_mode = #tpu.pipeline_mode<synchronous>, transform_indices = @transform_1, window_bounds = array<i64: 1, 128>}, {pipeline_mode = #tpu.pipeline_mode<synchronous>, transform_indices = @transform_2, window_bounds = array<i64: 1, 128>}, {pipeline_mode = #tpu.pipeline_mode<synchronous>, transform_indices = @transform_3, window_bounds = array<i64: 128, 384>}, {pipeline_mode = #tpu.pipeline_mode<synchronous>, transform_indices = @transform_4, window_bounds = array<i64: 1, 384>}, {pipeline_mode = #tpu.pipeline_mode<synchronous>, transform_indices = @transform_5, window_bounds = array<i64: 128, 128>}, {pipeline_mode = #tpu.pipeline_mode<synchronous>, transform_indices = @transform_6, window_bounds = array<i64: 1, 128>}, {pipeline_mode = #tpu.pipeline_mode<synchronous>, transform_indices = @transform_7, window_bounds = array<i64: 1, 128>}, {pipeline_mode = #tpu.pipeline_mode<synchronous>, transform_indices = @transform_8, window_bounds = array<i64: 1, 128>}, {pipeline_mode = #tpu.pipeline_mode<synchronous>, transform_indices = @transform_9, window_bounds = array<i64: 128, 256>}, {pipeline_mode = #tpu.pipeline_mode<synchronous>, transform_indices = @transform_10, window_bounds = array<i64: 1, 256>}, {pipeline_mode = #tpu.pipeline_mode<synchronous>, transform_indices = @transform_11, window_bounds = array<i64: 256, 128>}, {pipeline_mode = #tpu.pipeline_mode<synchronous>, transform_indices = @transform_12, window_bounds = array<i64: 1, 128>}, {transform_indices = @transform_13, window_bounds = array<i64: 1, 16, 128>}]} {
    %c0 = arith.constant 0 : index
    %c0_0 = arith.constant 0 : index
    %c0_1 = arith.constant 0 : index
    %0 = vector.load %arg1[%c0, %c0_0, %c0_1] : memref<1x16x128xf32, #tpu.memory_space<vmem>>, vector<1x16x128xf32>
    %1 = vector.shape_cast %0 : vector<1x16x128xf32> to vector<16x128xf32>
    %c0_2 = arith.constant 0 : index
    %c0_3 = arith.constant 0 : index
    %2 = vector.load %arg2[%c0_2, %c0_3] : memref<1x128xf32, #tpu.memory_space<vmem>>, vector<1x128xf32>
    %c0_4 = arith.constant 0 : index
    %c0_5 = arith.constant 0 : index
    %3 = vector.load %arg3[%c0_4, %c0_5] : memref<1x128xf32, #tpu.memory_space<vmem>>, vector<1x128xf32>
    %cst = arith.constant dense<0.000000e+00> : vector<16xf32>
    %4 = vector.multi_reduction <add>, %1, %cst [1] : vector<16x128xf32> to vector<16xf32>
    %5 = vector.shape_cast %4 : vector<16xf32> to vector<16x1xf32>
    %cst_6 = arith.constant 1.280000e+02 : f32
    %6 = vector.broadcast %cst_6 : f32 to vector<16x1xf32>
    %7 = arith.divf %5, %6 : vector<16x1xf32>
    %8 = vector.broadcast %7 : vector<16x1xf32> to vector<16x128xf32>
    %9 = arith.subf %1, %8 : vector<16x128xf32>
    %10 = arith.mulf %9, %9 : vector<16x128xf32>
    %cst_7 = arith.constant dense<0.000000e+00> : vector<16xf32>
    %11 = vector.multi_reduction <add>, %10, %cst_7 [1] : vector<16x128xf32> to vector<16xf32>
    %12 = vector.shape_cast %11 : vector<16xf32> to vector<16x1xf32>
    %cst_8 = arith.constant 1.280000e+02 : f32
    %13 = vector.broadcast %cst_8 : f32 to vector<16x1xf32>
    %14 = arith.divf %12, %13 : vector<16x1xf32>
    %15 = vector.broadcast %7 : vector<16x1xf32> to vector<16x128xf32>
    %16 = arith.subf %1, %15 : vector<16x128xf32>
    %cst_9 = arith.constant 9.99999974E-6 : f32
    %17 = vector.broadcast %cst_9 : f32 to vector<16x1xf32>
    %18 = arith.addf %14, %17 : vector<16x1xf32>
    %19 = math.rsqrt %18 : vector<16x1xf32>
    %20 = vector.broadcast %19 : vector<16x1xf32> to vector<16x128xf32>
    %21 = arith.mulf %16, %20 : vector<16x128xf32>
    %22 = vector.broadcast %2 : vector<1x128xf32> to vector<16x128xf32>
    %23 = arith.mulf %21, %22 : vector<16x128xf32>
    %24 = vector.broadcast %3 : vector<1x128xf32> to vector<16x128xf32>
    %25 = arith.addf %23, %24 : vector<16x128xf32>
    %c0_10 = arith.constant 0 : index
    %c0_11 = arith.constant 0 : index
    %26 = vector.load %arg4[%c0_10, %c0_11] : memref<128x384xf32, #tpu.memory_space<vmem>>, vector<128x384xf32>
    %cst_12 = arith.constant dense<0.000000e+00> : vector<16x384xf32>
    %27 = tpu.matmul %25, %26, %cst_12 {dimension_numbers = #tpu.dot_dimension_numbers<[1], [0], [0], [1], [0, 0, 1, 1], [], []>} : vector<16x128xf32>, vector<128x384xf32>, vector<16x384xf32> -> vector<16x384xf32>
    %c0_13 = arith.constant 0 : index
    %c0_14 = arith.constant 0 : index
    %28 = vector.load %arg5[%c0_13, %c0_14] : memref<1x384xf32, #tpu.memory_space<vmem>>, vector<1x384xf32>
    %29 = vector.broadcast %28 : vector<1x384xf32> to vector<16x384xf32>
    %30 = arith.addf %27, %29 : vector<16x384xf32>
    %31 = vector.extract_strided_slice %30 {offsets = [0, 0], sizes = [16, 128], strides = [1, 1]} : vector<16x384xf32> to vector<16x128xf32>
    %cst_15 = arith.constant 0.176776692 : f32
    %32 = vector.broadcast %cst_15 : f32 to vector<16x128xf32>
    %33 = arith.mulf %31, %32 : vector<16x128xf32>
    %34 = vector.extract_strided_slice %30 {offsets = [0, 128], sizes = [16, 128], strides = [1, 1]} : vector<16x384xf32> to vector<16x128xf32>
    %35 = vector.extract_strided_slice %30 {offsets = [0, 256], sizes = [16, 128], strides = [1, 1]} : vector<16x384xf32> to vector<16x128xf32>
    %36 = vector.extract_strided_slice %33 {offsets = [0, 0], sizes = [16, 32], strides = [1, 1]} : vector<16x128xf32> to vector<16x32xf32>
    %37 = vector.extract_strided_slice %34 {offsets = [0, 0], sizes = [16, 32], strides = [1, 1]} : vector<16x128xf32> to vector<16x32xf32>
    %38 = vector.extract_strided_slice %35 {offsets = [0, 0], sizes = [16, 32], strides = [1, 1]} : vector<16x128xf32> to vector<16x32xf32>
    %cst_16 = arith.constant dense<0.000000e+00> : vector<16x16xf32>
    %39 = tpu.matmul %36, %37, %cst_16 {dimension_numbers = #tpu.dot_dimension_numbers<[1], [1], [0], [0], [0, 0, 1, 0], [], []>} : vector<16x32xf32>, vector<16x32xf32>, vector<16x16xf32> -> vector<16x16xf32>
    %cst_17 = arith.constant dense<0xFF800000> : vector<16xf32>
    %40 = vector.multi_reduction <maximumf>, %39, %cst_17 [1] : vector<16x16xf32> to vector<16xf32>
    %41 = vector.shape_cast %40 : vector<16xf32> to vector<16x1xf32>
    %42 = vector.broadcast %41 : vector<16x1xf32> to vector<16x16xf32>
    %43 = arith.subf %39, %42 : vector<16x16xf32>
    %44 = math.exp %43 : vector<16x16xf32>
    %cst_18 = arith.constant dense<0.000000e+00> : vector<16xf32>
    %45 = vector.multi_reduction <add>, %44, %cst_18 [1] : vector<16x16xf32> to vector<16xf32>
    %46 = vector.shape_cast %45 : vector<16xf32> to vector<16x1xf32>
    %47 = tpu.reciprocal %46 {approx = true} : vector<16x1xf32> -> vector<16x1xf32>
    %48 = vector.broadcast %47 : vector<16x1xf32> to vector<16x16xf32>
    %49 = arith.mulf %44, %48 : vector<16x16xf32>
    %cst_19 = arith.constant dense<0.000000e+00> : vector<16x32xf32>
    %50 = tpu.matmul %49, %38, %cst_19 {dimension_numbers = #tpu.dot_dimension_numbers<[1], [0], [0], [1], [0, 0, 1, 1], [], []>} : vector<16x16xf32>, vector<16x32xf32>, vector<16x32xf32> -> vector<16x32xf32>
    %c0_20 = arith.constant 0 : index
    %c0_21 = arith.constant 0 : index
    %51 = vector.load %arg15[%c0_20, %c0_21] : memref<16x128xf32, #tpu.memory_space<vmem>>, vector<16x32xf32>
    tpu.vector_store %arg15[%c0_20, %c0_21], %50 {strides = array<i32>} : memref<16x128xf32, #tpu.memory_space<vmem>>, vector<16x32xf32>,
    %52 = vector.extract_strided_slice %33 {offsets = [0, 32], sizes = [16, 32], strides = [1, 1]} : vector<16x128xf32> to vector<16x32xf32>
    %53 = vector.extract_strided_slice %34 {offsets = [0, 32], sizes = [16, 32], strides = [1, 1]} : vector<16x128xf32> to vector<16x32xf32>
    %54 = vector.extract_strided_slice %35 {offsets = [0, 32], sizes = [16, 32], strides = [1, 1]} : vector<16x128xf32> to vector<16x32xf32>
    %cst_22 = arith.constant dense<0.000000e+00> : vector<16x16xf32>
    %55 = tpu.matmul %52, %53, %cst_22 {dimension_numbers = #tpu.dot_dimension_numbers<[1], [1], [0], [0], [0, 0, 1, 0], [], []>} : vector<16x32xf32>, vector<16x32xf32>, vector<16x16xf32> -> vector<16x16xf32>
    %cst_23 = arith.constant dense<0xFF800000> : vector<16xf32>
    %56 = vector.multi_reduction <maximumf>, %55, %cst_23 [1] : vector<16x16xf32> to vector<16xf32>
    %57 = vector.shape_cast %56 : vector<16xf32> to vector<16x1xf32>
    %58 = vector.broadcast %57 : vector<16x1xf32> to vector<16x16xf32>
    %59 = arith.subf %55, %58 : vector<16x16xf32>
    %60 = math.exp %59 : vector<16x16xf32>
    %cst_24 = arith.constant dense<0.000000e+00> : vector<16xf32>
    %61 = vector.multi_reduction <add>, %60, %cst_24 [1] : vector<16x16xf32> to vector<16xf32>
    %62 = vector.shape_cast %61 : vector<16xf32> to vector<16x1xf32>
    %63 = tpu.reciprocal %62 {approx = true} : vector<16x1xf32> -> vector<16x1xf32>
    %64 = vector.broadcast %63 : vector<16x1xf32> to vector<16x16xf32>
    %65 = arith.mulf %60, %64 : vector<16x16xf32>
    %cst_25 = arith.constant dense<0.000000e+00> : vector<16x32xf32>
    %66 = tpu.matmul %65, %54, %cst_25 {dimension_numbers = #tpu.dot_dimension_numbers<[1], [0], [0], [1], [0, 0, 1, 1], [], []>} : vector<16x16xf32>, vector<16x32xf32>, vector<16x32xf32> -> vector<16x32xf32>
    %c0_26 = arith.constant 0 : index
    %c32 = arith.constant 32 : index
    %67 = vector.load %arg15[%c0_26, %c32] : memref<16x128xf32, #tpu.memory_space<vmem>>, vector<16x32xf32>
    tpu.vector_store %arg15[%c0_26, %c32], %66 {strides = array<i32>} : memref<16x128xf32, #tpu.memory_space<vmem>>, vector<16x32xf32>,
    %68 = vector.extract_strided_slice %33 {offsets = [0, 64], sizes = [16, 32], strides = [1, 1]} : vector<16x128xf32> to vector<16x32xf32>
    %69 = vector.extract_strided_slice %34 {offsets = [0, 64], sizes = [16, 32], strides = [1, 1]} : vector<16x128xf32> to vector<16x32xf32>
    %70 = vector.extract_strided_slice %35 {offsets = [0, 64], sizes = [16, 32], strides = [1, 1]} : vector<16x128xf32> to vector<16x32xf32>
    %cst_27 = arith.constant dense<0.000000e+00> : vector<16x16xf32>
    %71 = tpu.matmul %68, %69, %cst_27 {dimension_numbers = #tpu.dot_dimension_numbers<[1], [1], [0], [0], [0, 0, 1, 0], [], []>} : vector<16x32xf32>, vector<16x32xf32>, vector<16x16xf32> -> vector<16x16xf32>
    %cst_28 = arith.constant dense<0xFF800000> : vector<16xf32>
    %72 = vector.multi_reduction <maximumf>, %71, %cst_28 [1] : vector<16x16xf32> to vector<16xf32>
    %73 = vector.shape_cast %72 : vector<16xf32> to vector<16x1xf32>
    %74 = vector.broadcast %73 : vector<16x1xf32> to vector<16x16xf32>
    %75 = arith.subf %71, %74 : vector<16x16xf32>
    %76 = math.exp %75 : vector<16x16xf32>
    %cst_29 = arith.constant dense<0.000000e+00> : vector<16xf32>
    %77 = vector.multi_reduction <add>, %76, %cst_29 [1] : vector<16x16xf32> to vector<16xf32>
    %78 = vector.shape_cast %77 : vector<16xf32> to vector<16x1xf32>
    %79 = tpu.reciprocal %78 {approx = true} : vector<16x1xf32> -> vector<16x1xf32>
    %80 = vector.broadcast %79 : vector<16x1xf32> to vector<16x16xf32>
    %81 = arith.mulf %76, %80 : vector<16x16xf32>
    %cst_30 = arith.constant dense<0.000000e+00> : vector<16x32xf32>
    %82 = tpu.matmul %81, %70, %cst_30 {dimension_numbers = #tpu.dot_dimension_numbers<[1], [0], [0], [1], [0, 0, 1, 1], [], []>} : vector<16x16xf32>, vector<16x32xf32>, vector<16x32xf32> -> vector<16x32xf32>
    %c0_31 = arith.constant 0 : index
    %c64 = arith.constant 64 : index
    %83 = vector.load %arg15[%c0_31, %c64] : memref<16x128xf32, #tpu.memory_space<vmem>>, vector<16x32xf32>
    tpu.vector_store %arg15[%c0_31, %c64], %82 {strides = array<i32>} : memref<16x128xf32, #tpu.memory_space<vmem>>, vector<16x32xf32>,
    %84 = vector.extract_strided_slice %33 {offsets = [0, 96], sizes = [16, 32], strides = [1, 1]} : vector<16x128xf32> to vector<16x32xf32>
    %85 = vector.extract_strided_slice %34 {offsets = [0, 96], sizes = [16, 32], strides = [1, 1]} : vector<16x128xf32> to vector<16x32xf32>
    %86 = vector.extract_strided_slice %35 {offsets = [0, 96], sizes = [16, 32], strides = [1, 1]} : vector<16x128xf32> to vector<16x32xf32>
    %cst_32 = arith.constant dense<0.000000e+00> : vector<16x16xf32>
    %87 = tpu.matmul %84, %85, %cst_32 {dimension_numbers = #tpu.dot_dimension_numbers<[1], [1], [0], [0], [0, 0, 1, 0], [], []>} : vector<16x32xf32>, vector<16x32xf32>, vector<16x16xf32> -> vector<16x16xf32>
    %cst_33 = arith.constant dense<0xFF800000> : vector<16xf32>
    %88 = vector.multi_reduction <maximumf>, %87, %cst_33 [1] : vector<16x16xf32> to vector<16xf32>
    %89 = vector.shape_cast %88 : vector<16xf32> to vector<16x1xf32>
    %90 = vector.broadcast %89 : vector<16x1xf32> to vector<16x16xf32>
    %91 = arith.subf %87, %90 : vector<16x16xf32>
    %92 = math.exp %91 : vector<16x16xf32>
    %cst_34 = arith.constant dense<0.000000e+00> : vector<16xf32>
    %93 = vector.multi_reduction <add>, %92, %cst_34 [1] : vector<16x16xf32> to vector<16xf32>
    %94 = vector.shape_cast %93 : vector<16xf32> to vector<16x1xf32>
    %95 = tpu.reciprocal %94 {approx = true} : vector<16x1xf32> -> vector<16x1xf32>
    %96 = vector.broadcast %95 : vector<16x1xf32> to vector<16x16xf32>
    %97 = arith.mulf %92, %96 : vector<16x16xf32>
    %cst_35 = arith.constant dense<0.000000e+00> : vector<16x32xf32>
    %98 = tpu.matmul %97, %86, %cst_35 {dimension_numbers = #tpu.dot_dimension_numbers<[1], [0], [0], [1], [0, 0, 1, 1], [], []>} : vector<16x16xf32>, vector<16x32xf32>, vector<16x32xf32> -> vector<16x32xf32>
    %c0_36 = arith.constant 0 : index
    %c96 = arith.constant 96 : index
    %99 = vector.load %arg15[%c0_36, %c96] : memref<16x128xf32, #tpu.memory_space<vmem>>, vector<16x32xf32>
    tpu.vector_store %arg15[%c0_36, %c96], %98 {strides = array<i32>} : memref<16x128xf32, #tpu.memory_space<vmem>>, vector<16x32xf32>,
    %c0_37 = arith.constant 0 : index
    %c0_38 = arith.constant 0 : index
    %100 = vector.load %arg15[%c0_37, %c0_38] : memref<16x128xf32, #tpu.memory_space<vmem>>, vector<16x128xf32>
    %c0_39 = arith.constant 0 : index
    %c0_40 = arith.constant 0 : index
    %101 = vector.load %arg6[%c0_39, %c0_40] : memref<128x128xf32, #tpu.memory_space<vmem>>, vector<128x128xf32>
    %cst_41 = arith.constant dense<0.000000e+00> : vector<16x128xf32>
    %102 = tpu.matmul %100, %101, %cst_41 {dimension_numbers = #tpu.dot_dimension_numbers<[1], [0], [0], [1], [0, 0, 1, 1], [], []>} : vector<16x128xf32>, vector<128x128xf32>, vector<16x128xf32> -> vector<16x128xf32>
    %c0_42 = arith.constant 0 : index
    %c0_43 = arith.constant 0 : index
    %103 = vector.load %arg7[%c0_42, %c0_43] : memref<1x128xf32, #tpu.memory_space<vmem>>, vector<1x128xf32>
    %104 = vector.broadcast %103 : vector<1x128xf32> to vector<16x128xf32>
    %105 = arith.addf %102, %104 : vector<16x128xf32>
    %106 = arith.addf %1, %105 : vector<16x128xf32>
    %c0_44 = arith.constant 0 : index
    %c0_45 = arith.constant 0 : index
    %107 = vector.load %arg8[%c0_44, %c0_45] : memref<1x128xf32, #tpu.memory_space<vmem>>, vector<1x128xf32>
    %c0_46 = arith.constant 0 : index
    %c0_47 = arith.constant 0 : index
    %108 = vector.load %arg9[%c0_46, %c0_47] : memref<1x128xf32, #tpu.memory_space<vmem>>, vector<1x128xf32>
    %cst_48 = arith.constant dense<0.000000e+00> : vector<16xf32>
    %109 = vector.multi_reduction <add>, %106, %cst_48 [1] : vector<16x128xf32> to vector<16xf32>
    %110 = vector.shape_cast %109 : vector<16xf32> to vector<16x1xf32>
    %cst_49 = arith.constant 1.280000e+02 : f32
    %111 = vector.broadcast %cst_49 : f32 to vector<16x1xf32>
    %112 = arith.divf %110, %111 : vector<16x1xf32>
    %113 = vector.broadcast %112 : vector<16x1xf32> to vector<16x128xf32>
    %114 = arith.subf %106, %113 : vector<16x128xf32>
    %115 = arith.mulf %114, %114 : vector<16x128xf32>
    %cst_50 = arith.constant dense<0.000000e+00> : vector<16xf32>
    %116 = vector.multi_reduction <add>, %115, %cst_50 [1] : vector<16x128xf32> to vector<16xf32>
    %117 = vector.shape_cast %116 : vector<16xf32> to vector<16x1xf32>
    %cst_51 = arith.constant 1.280000e+02 : f32
    %118 = vector.broadcast %cst_51 : f32 to vector<16x1xf32>
    %119 = arith.divf %117, %118 : vector<16x1xf32>
    %120 = vector.broadcast %112 : vector<16x1xf32> to vector<16x128xf32>
    %121 = arith.subf %106, %120 : vector<16x128xf32>
    %cst_52 = arith.constant 9.99999974E-6 : f32
    %122 = vector.broadcast %cst_52 : f32 to vector<16x1xf32>
    %123 = arith.addf %119, %122 : vector<16x1xf32>
    %124 = math.rsqrt %123 : vector<16x1xf32>
    %125 = vector.broadcast %124 : vector<16x1xf32> to vector<16x128xf32>
    %126 = arith.mulf %121, %125 : vector<16x128xf32>
    %127 = vector.broadcast %107 : vector<1x128xf32> to vector<16x128xf32>
    %128 = arith.mulf %126, %127 : vector<16x128xf32>
    %129 = vector.broadcast %108 : vector<1x128xf32> to vector<16x128xf32>
    %130 = arith.addf %128, %129 : vector<16x128xf32>
    %cst_53 = arith.constant 0.000000e+00 : f32
    %131 = vector.broadcast %cst_53 : f32 to vector<16x128xf32>
    %c0_54 = arith.constant 0 : index
    %c0_55 = arith.constant 0 : index
    %132 = vector.load %arg10[%c0_54, %c0_55] : memref<128x256xf32, #tpu.memory_space<vmem>>, vector<128x256xf32>
    %c0_56 = arith.constant 0 : index
    %c0_57 = arith.constant 0 : index
    %133 = vector.load %arg11[%c0_56, %c0_57] : memref<1x256xf32, #tpu.memory_space<vmem>>, vector<1x256xf32>
    %c0_58 = arith.constant 0 : index
    %c0_59 = arith.constant 0 : index
    %134 = vector.load %arg12[%c0_58, %c0_59] : memref<256x128xf32, #tpu.memory_space<vmem>>, vector<256x128xf32>
    %cst_60 = arith.constant dense<0.000000e+00> : vector<16x256xf32>
    %135 = tpu.matmul %130, %132, %cst_60 {dimension_numbers = #tpu.dot_dimension_numbers<[1], [0], [0], [1], [0, 0, 1, 1], [], []>} : vector<16x128xf32>, vector<128x256xf32>, vector<16x256xf32> -> vector<16x256xf32>
    %136 = vector.broadcast %133 : vector<1x256xf32> to vector<16x256xf32>
    %137 = arith.addf %135, %136 : vector<16x256xf32>
    %cst_61 = arith.constant 5.000000e-01 : f32
    %138 = vector.broadcast %cst_61 : f32 to vector<16x256xf32>
    %139 = arith.mulf %138, %137 : vector<16x256xf32>
    %cst_62 = arith.constant 0.707106769 : f32
    %140 = vector.broadcast %cst_62 : f32 to vector<16x256xf32>
    %141 = arith.mulf %137, %140 : vector<16x256xf32>
    %142 = math.erf %141 : vector<16x256xf32>
    %cst_63 = arith.constant 1.000000e+00 : f32
    %143 = vector.broadcast %cst_63 : f32 to vector<16x256xf32>
    %144 = arith.addf %143, %142 : vector<16x256xf32>
    %145 = arith.mulf %139, %144 : vector<16x256xf32>
    %cst_64 = arith.constant dense<0.000000e+00> : vector<16x128xf32>
    %146 = tpu.matmul %145, %134, %cst_64 {dimension_numbers = #tpu.dot_dimension_numbers<[1], [0], [0], [1], [0, 0, 1, 1], [], []>} : vector<16x256xf32>, vector<256x128xf32>, vector<16x128xf32> -> vector<16x128xf32>
    %147 = arith.addf %131, %146 : vector<16x128xf32>
    %c0_65 = arith.constant 0 : index
    %c0_66 = arith.constant 0 : index
    %148 = vector.load %arg13[%c0_65, %c0_66] : memref<1x128xf32, #tpu.memory_space<vmem>>, vector<1x128xf32>
    %149 = vector.broadcast %148 : vector<1x128xf32> to vector<16x128xf32>
    %150 = arith.addf %147, %149 : vector<16x128xf32>
    %151 = arith.addf %106, %150 : vector<16x128xf32>
    %c0_67 = arith.constant 0 : index
    %c0_68 = arith.constant 0 : index
    %c0_69 = arith.constant 0 : index
    %152 = vector.load %arg14[%c0_67, %c0_68, %c0_69] : memref<1x16x128xf32, #tpu.memory_space<vmem>>, vector<1x16x128xf32>
    %153 = vector.shape_cast %152 : vector<1x16x128xf32> to vector<16x128xf32>
    %154 = vector.shape_cast %151 : vector<16x128xf32> to vector<1x16x128xf32>
    tpu.vector_store %arg14[%c0_67, %c0_68, %c0_69], %154 {strides = array<i32>} : memref<1x16x128xf32, #tpu.memory_space<vmem>>, vector<1x16x128xf32>,
    return
  }
  func.func @transform_0(%arg0: i32) -> (i32, i32, i32) {
    %c0_i32 = arith.constant 0 : i32
    %c0_i32_0 = arith.constant 0 : i32
    %c0_i32_1 = arith.constant 0 : i32
    return %arg0, %c0_i32, %c0_i32_0 : i32, i32, i32
  }
  func.func @transform_1(%arg0: i32) -> (i32, i32) {
    %c0_i32 = arith.constant 0 : i32
    %c0_i32_0 = arith.constant 0 : i32
    %c0_i32_1 = arith.constant 0 : i32
    return %c0_i32, %c0_i32_0 : i32, i32
  }
  func.func @transform_2(%arg0: i32) -> (i32, i32) {
    %c0_i32 = arith.constant 0 : i32
    %c0_i32_0 = arith.constant 0 : i32
    %c0_i32_1 = arith.constant 0 : i32
    return %c0_i32, %c0_i32_0 : i32, i32
  }
  func.func @transform_3(%arg0: i32) -> (i32, i32) {
    %c0_i32 = arith.constant 0 : i32
    %c0_i32_0 = arith.constant 0 : i32
    %c0_i32_1 = arith.constant 0 : i32
    return %c0_i32, %c0_i32_0 : i32, i32
  }
  func.func @transform_4(%arg0: i32) -> (i32, i32) {
    %c0_i32 = arith.constant 0 : i32
    %c0_i32_0 = arith.constant 0 : i32
    %c0_i32_1 = arith.constant 0 : i32
    return %c0_i32, %c0_i32_0 : i32, i32
  }
  func.func @transform_5(%arg0: i32) -> (i32, i32) {
    %c0_i32 = arith.constant 0 : i32
    %c0_i32_0 = arith.constant 0 : i32
    %c0_i32_1 = arith.constant 0 : i32
    return %c0_i32, %c0_i32_0 : i32, i32
  }
  func.func @transform_6(%arg0: i32) -> (i32, i32) {
    %c0_i32 = arith.constant 0 : i32
    %c0_i32_0 = arith.constant 0 : i32
    %c0_i32_1 = arith.constant 0 : i32
    return %c0_i32, %c0_i32_0 : i32, i32
  }
  func.func @transform_7(%arg0: i32) -> (i32, i32) {
    %c0_i32 = arith.constant 0 : i32
    %c0_i32_0 = arith.constant 0 : i32
    %c0_i32_1 = arith.constant 0 : i32
    return %c0_i32, %c0_i32_0 : i32, i32
  }
  func.func @transform_8(%arg0: i32) -> (i32, i32) {
    %c0_i32 = arith.constant 0 : i32
    %c0_i32_0 = arith.constant 0 : i32
    %c0_i32_1 = arith.constant 0 : i32
    return %c0_i32, %c0_i32_0 : i32, i32
  }
  func.func @transform_9(%arg0: i32) -> (i32, i32) {
    %c0_i32 = arith.constant 0 : i32
    %c0_i32_0 = arith.constant 0 : i32
    %c0_i32_1 = arith.constant 0 : i32
    return %c0_i32, %c0_i32_0 : i32, i32
  }
  func.func @transform_10(%arg0: i32) -> (i32, i32) {
    %c0_i32 = arith.constant 0 : i32
    %c0_i32_0 = arith.constant 0 : i32
    %c0_i32_1 = arith.constant 0 : i32
    return %c0_i32, %c0_i32_0 : i32, i32
  }
  func.func @transform_11(%arg0: i32) -> (i32, i32) {
    %c0_i32 = arith.constant 0 : i32
    %c0_i32_0 = arith.constant 0 : i32
    %c0_i32_1 = arith.constant 0 : i32
    return %c0_i32, %c0_i32_0 : i32, i32
  }
  func.func @transform_12(%arg0: i32) -> (i32, i32) {
    %c0_i32 = arith.constant 0 : i32
    %c0_i32_0 = arith.constant 0 : i32
    %c0_i32_1 = arith.constant 0 : i32
    return %c0_i32, %c0_i32_0 : i32, i32
  }
  func.func @transform_13(%arg0: i32) -> (i32, i32, i32) {
    %c0_i32 = arith.constant 0 : i32
    %c0_i32_0 = arith.constant 0 : i32
    %c0_i32_1 = arith.constant 0 : i32
    return %arg0, %c0_i32, %c0_i32_0 : i32, i32, i32
  }
}

</mosaic_0001>

<llo_original>
// kernel: tpu_custom_call.1
$region0: #{tpu_custom_call.1}
  #allocation0 [shape = 'u32[]', space=smem, size = 0x4, offset = 0x4, fixed_abs, tag = 'smem constant byte address 0x4 - core index']
  #allocation1 [shape = 'u32[72,128]{1,0:T(1,128)}', space=vmem, size = 0x9000, scoped, tag = 'internal scratch']
  #allocation2 [shape = 'f32[16,128]{1,0:T(8,128)}', space=vmem, size = 0x2000, scoped, tag = 'scratch operand']
  %s0 = inlined_call_operand.hbm [shape: f32[2,16,128], index: 0, kind: input, shape index: {}]
  %s1 = inlined_call_operand.hbm [shape: f32[1,128], index: 1, kind: input, shape index: {}]
  %s2 = inlined_call_operand.hbm [shape: f32[1,128], index: 2, kind: input, shape index: {}]
  %s3 = inlined_call_operand.hbm [shape: f32[128,384], index: 3, kind: input, shape index: {}]
  %s4 = inlined_call_operand.vmem [shape: f32[1,384], index: 4, kind: input, shape index: {}]
  %s5 = inlined_call_operand.hbm [shape: f32[128,128], index: 5, kind: input, shape index: {}]
  %s6 = inlined_call_operand.hbm [shape: f32[1,128], index: 6, kind: input, shape index: {}]
  %s7 = inlined_call_operand.vmem [shape: f32[1,128], index: 7, kind: input, shape index: {}]
  %s8 = inlined_call_operand.vmem [shape: f32[1,128], index: 8, kind: input, shape index: {}]
  %s9 = inlined_call_operand.hbm [shape: f32[128,256], index: 9, kind: input, shape index: {}]
  %s10 = inlined_call_operand.vmem [shape: f32[1,256], index: 10, kind: input, shape index: {}]
  %s11 = inlined_call_operand.hbm [shape: f32[256,128], index: 11, kind: input, shape index: {}]
  %s12 = inlined_call_operand.vmem [shape: f32[1,128], index: 12, kind: input, shape index: {}]
  %s13 = inlined_call_operand.hbm [shape: f32[2,16,128], index: 13, kind: output, shape index: {}]
  %s14 = sld [smem:[#allocation0]]
  $region117: #{tpu_custom_call.1} parent=0
    _
  %s16 = ssub.s32 1, %s14
  %s17 = scalar_select 0, %s16, %s14
  $region1: #{tpu_custom_call.1} parent=0
    #allocation3 [shape = 'u8[16384]{0}', space=vmem, size = 0x4000, scoped, tag = 'input window, operand 0']
    #allocation4 [shape = 's32[2]{0}', space=sflag, size = 0x8, scoped, tag = 'scoped memory for tpu_custom_call.1']
    #allocation5 [shape = 's32[2]{0}', space=sflag, size = 0x8, scoped, tag = 'scoped memory for tpu_custom_call.1']
    #allocation6 [shape = 'u8[512]{0}', space=vmem, size = 0x400, scoped, tag = 'input window, operand 1, single buffered']
    #allocation7 [shape = 's32[1]{0}', space=sflag, size = 0x4, scoped, tag = 'scoped memory for tpu_custom_call.1']
    #allocation8 [shape = 'u8[512]{0}', space=vmem, size = 0x400, scoped, tag = 'input window, operand 2, single buffered']
    #allocation9 [shape = 'u8[196608]{0}', space=vmem, size = 0x30000, scoped, tag = 'input window, operand 3, single buffered']
    #allocation10 [shape = 's32[1]{0}', space=sflag, size = 0x4, scoped, tag = 'scoped memory for tpu_custom_call.1']
    #allocation11 [shape = 'u8[65536]{0}', space=vmem, size = 0x10000, scoped, tag = 'input window, operand 5, single buffered']
    #allocation12 [shape = 'u8[512]{0}', space=vmem, size = 0x400, scoped, tag = 'input window, operand 6, single buffered']
    #allocation13 [shape = 's32[1]{0}', space=sflag, size = 0x4, scoped, tag = 'scoped memory for tpu_custom_call.1']
    #allocation14 [shape = 'u8[131072]{0}', space=vmem, size = 0x20000, scoped, tag = 'input window, operand 9, single buffered']
    #allocation15 [shape = 'u8[131072]{0}', space=vmem, size = 0x20000, scoped, tag = 'input window, operand 11, single buffered']
    #allocation16 [shape = 's32[1]{0}', space=sflag, size = 0x4, scoped, tag = 'scoped memory for tpu_custom_call.1']
    #allocation17 [shape = 'u8[16384]{0}', space=vmem, size = 0x4000, scoped, tag = 'output window, operand 0']
    %18 = vsyncpa [#allocation4], 0
    %s19 = scalar_lea.sflag [#allocation4], 1
    %20 = vsyncpa %s19, 0
    %21 = vsyncpa [#allocation7], 0
    %22 = vsyncpa [#allocation10], 0
    %23 = vsyncpa [#allocation13], 0
    %24 = vsyncpa [#allocation16], 0
    %25 = vsyncpa [#allocation5], 0
    %s26 = scalar_lea.sflag [#allocation5], 1
    %27 = vsyncpa %s26, 0
    loop: start=0, step=1, limit=4
    $region2: #{tpu_custom_call.1} parent=1 // loop_pre_header
      _
    $region3: #{tpu_custom_call.1} parent=1 // loop_header
      %s29 = sphi 0, %s33
      %p30 = scmp.ge.s32.totalorder %s29, 4
      %s39 = sphi 0, %s41
      %s42 = sphi 0, %s39
      %s43 = sphi 0, %s42
      %s59 = sphi 0, %s43
      %s63 = sphi 0, %s63
      %s65 = sphi 0, %s63
      %s66 = sphi 0, %s65
      %s80 = sphi 0, %s66
      %s84 = sphi 0, %s84
      %s86 = sphi 0, %s84
      %s87 = sphi 0, %s86
      %s101 = sphi 0, %s87
      %s105 = sphi 0, %s105
      %s107 = sphi 0, %s105
      %s108 = sphi 0, %s107
      %s122 = sphi 0, %s108
      %s126 = sphi 0, %s126
      %s128 = sphi 0, %s126
      %s129 = sphi 0, %s128
      %s143 = sphi 0, %s129
      %s147 = sphi 0, %s147
      %s149 = sphi 0, %s147
      %s150 = sphi 0, %s149
      %s164 = sphi 0, %s150
      %s168 = sphi 0, %s168
      %s170 = sphi 0, %s168
      %s171 = sphi 0, %s170
      %s185 = sphi 0, %s171
      %s189 = sphi 0, %s189
      %s191 = sphi 0, %s189
      %s192 = sphi 0, %s191
      %s206 = sphi 0, %s192
      %s210 = sphi 0, %s210
      %s212 = sphi 0, %s210
      %s213 = sphi 0, %s212
      %s227 = sphi 0, %s213
      %s231 = sphi 0, %s231
      %s233 = sphi 0, %s231
      %s234 = sphi 0, %s233
      %s248 = sphi 0, %s234
      %s252 = sphi 0, %s252
      %s254 = sphi 0, %s252
      %s255 = sphi 0, %s254
      %s269 = sphi 0, %s255
      %s273 = sphi 0, %s273
      %s275 = sphi 0, %s273
      %s276 = sphi 0, %s275
      %s290 = sphi 0, %s276
      %s294 = sphi 0, %s294
      %s296 = sphi 0, %s294
      %s297 = sphi 0, %s296
      %s311 = sphi 0, %s297
      %s317 = sphi 0, %s319
      %s320 = sphi 0, %s317
      %s321 = sphi 0, %s320
      %s337 = sphi 0, %s321
    $region4: #{tpu_custom_call.1} parent=1 // loop_header_branch
      %32 = sbr.rel (%p30) target = $region8
    $region5: #{tpu_custom_call.1} parent=1 // loop_body
      %s34 = ssub.s32 %s29, 1
      %s35 = ssub.s32 %s29, 2
      %s36 = sadd.s32 %s29, 1
      %s37 = ssub.s32 %s29, %s36
      %p38 = scmp.eq.s32.totalorder %s37, 0
      %s40 = sadd.s32 %s39, 1
      %s41 = scalar_select %p38, %s39, %s40
      %p44 = pneg %p38
      %p45 = scmp.eq.s32.totalorder %s29, 1
      %p46 = por %p44, %p45
      %p47 = scmp.ne.s32.totalorder %s39, %s42
      %p48 = scmp.eq.s32.totalorder %s29, 0
      %p49 = por %p47, %p48
      %p50 = scmp.ne.s32.totalorder %s39, %s42
      %p51 = scmp.eq.s32.totalorder %s34, 1
      %p52 = por %p50, %p51
      %p53 = scmp.ne.s32.totalorder %s42, %s43
      %p54 = scmp.eq.s32.totalorder %s34, 0
      %p55 = por %p53, %p54
      %p56 = scmp.ne.s32.totalorder %s42, %s43
      %p57 = scmp.eq.s32.totalorder %s35, 1
      %p58 = por %p56, %p57
      %p60 = scmp.ne.s32.totalorder %s43, %s59
      %p61 = scmp.eq.s32.totalorder %s35, 0
      %p62 = por %p60, %p61
      %s64 = sadd.s32 %s63, 1
      %p67 = scmp.eq.s32.totalorder %s29, 1
      %p68 = scmp.ne.s32.totalorder %s63, %s65
      %p69 = scmp.eq.s32.totalorder %s29, 0
      %p70 = por %p68, %p69
      %p71 = scmp.ne.s32.totalorder %s63, %s65
      %p72 = scmp.eq.s32.totalorder %s34, 1
      %p73 = por %p71, %p72
      %p74 = scmp.ne.s32.totalorder %s65, %s66
      %p75 = scmp.eq.s32.totalorder %s34, 0
      %p76 = por %p74, %p75
      %p77 = scmp.ne.s32.totalorder %s65, %s66
      %p78 = scmp.eq.s32.totalorder %s35, 1
      %p79 = por %p77, %p78
      %p81 = scmp.ne.s32.totalorder %s66, %s80
      %p82 = scmp.eq.s32.totalorder %s35, 0
      %p83 = por %p81, %p82
      %s85 = sadd.s32 %s84, 1
      %p88 = scmp.eq.s32.totalorder %s29, 1
      %p89 = scmp.ne.s32.totalorder %s84, %s86
      %p90 = scmp.eq.s32.totalorder %s29, 0
      %p91 = por %p89, %p90
      %p92 = scmp.ne.s32.totalorder %s84, %s86
      %p93 = scmp.eq.s32.totalorder %s34, 1
      %p94 = por %p92, %p93
      %p95 = scmp.ne.s32.totalorder %s86, %s87
      %p96 = scmp.eq.s32.totalorder %s34, 0
      %p97 = por %p95, %p96
      %p98 = scmp.ne.s32.totalorder %s86, %s87
      %p99 = scmp.eq.s32.totalorder %s35, 1
      %p100 = por %p98, %p99
      %p102 = scmp.ne.s32.totalorder %s87, %s101
      %p103 = scmp.eq.s32.totalorder %s35, 0
      %p104 = por %p102, %p103
      %s106 = sadd.s32 %s105, 1
      %p109 = scmp.eq.s32.totalorder %s29, 1
      %p110 = scmp.ne.s32.totalorder %s105, %s107
      %p111 = scmp.eq.s32.totalorder %s29, 0
      %p112 = por %p110, %p111
      %p113 = scmp.ne.s32.totalorder %s105, %s107
      %p114 = scmp.eq.s32.totalorder %s34, 1
      %p115 = por %p113, %p114
      %p116 = scmp.ne.s32.totalorder %s107, %s108
      %p117 = scmp.eq.s32.totalorder %s34, 0
      %p118 = por %p116, %p117
      %p119 = scmp.ne.s32.totalorder %s107, %s108
      %p120 = scmp.eq.s32.totalorder %s35, 1
      %p121 = por %p119, %p120
      %p123 = scmp.ne.s32.totalorder %s108, %s122
      %p124 = scmp.eq.s32.totalorder %s35, 0
      %p125 = por %p123, %p124
      %s127 = sadd.s32 %s126, 1
      %p130 = scmp.eq.s32.totalorder %s29, 1
      %p131 = scmp.ne.s32.totalorder %s126, %s128
      %p132 = scmp.eq.s32.totalorder %s29, 0
      %p133 = por %p131, %p132
      %p134 = scmp.ne.s32.totalorder %s126, %s128
      %p135 = scmp.eq.s32.totalorder %s34, 1
      %p136 = por %p134, %p135
      %p137 = scmp.ne.s32.totalorder %s128, %s129
      %p138 = scmp.eq.s32.totalorder %s34, 0
      %p139 = por %p137, %p138
      %p140 = scmp.ne.s32.totalorder %s128, %s129
      %p141 = scmp.eq.s32.totalorder %s35, 1
      %p142 = por %p140, %p141
      %p144 = scmp.ne.s32.totalorder %s129, %s143
      %p145 = scmp.eq.s32.totalorder %s35, 0
      %p146 = por %p144, %p145
      %s148 = sadd.s32 %s147, 1
      %p151 = scmp.eq.s32.totalorder %s29, 1
      %p152 = scmp.ne.s32.totalorder %s147, %s149
      %p153 = scmp.eq.s32.totalorder %s29, 0
      %p154 = por %p152, %p153
      %p155 = scmp.ne.s32.totalorder %s147, %s149
      %p156 = scmp.eq.s32.totalorder %s34, 1
      %p157 = por %p155, %p156
      %p158 = scmp.ne.s32.totalorder %s149, %s150
      %p159 = scmp.eq.s32.totalorder %s34, 0
      %p160 = por %p158, %p159
      %p161 = scmp.ne.s32.totalorder %s149, %s150
      %p162 = scmp.eq.s32.totalorder %s35, 1
      %p163 = por %p161, %p162
      %p165 = scmp.ne.s32.totalorder %s150, %s164
      %p166 = scmp.eq.s32.totalorder %s35, 0
      %p167 = por %p165, %p166
      %s169 = sadd.s32 %s168, 1
      %p172 = scmp.eq.s32.totalorder %s29, 1
      %p173 = scmp.ne.s32.totalorder %s168, %s170
      %p174 = scmp.eq.s32.totalorder %s29, 0
      %p175 = por %p173, %p174
      %p176 = scmp.ne.s32.totalorder %s168, %s170
      %p177 = scmp.eq.s32.totalorder %s34, 1
      %p178 = por %p176, %p177
      %p179 = scmp.ne.s32.totalorder %s170, %s171
      %p180 = scmp.eq.s32.totalorder %s34, 0
      %p181 = por %p179, %p180
      %p182 = scmp.ne.s32.totalorder %s170, %s171
      %p183 = scmp.eq.s32.totalorder %s35, 1
      %p184 = por %p182, %p183
      %p186 = scmp.ne.s32.totalorder %s171, %s185
      %p187 = scmp.eq.s32.totalorder %s35, 0
      %p188 = por %p186, %p187
      %s190 = sadd.s32 %s189, 1
      %p193 = scmp.eq.s32.totalorder %s29, 1
      %p194 = scmp.ne.s32.totalorder %s189, %s191
      %p195 = scmp.eq.s32.totalorder %s29, 0
      %p196 = por %p194, %p195
      %p197 = scmp.ne.s32.totalorder %s189, %s191
      %p198 = scmp.eq.s32.totalorder %s34, 1
      %p199 = por %p197, %p198
      %p200 = scmp.ne.s32.totalorder %s191, %s192
      %p201 = scmp.eq.s32.totalorder %s34, 0
      %p202 = por %p200, %p201
      %p203 = scmp.ne.s32.totalorder %s191, %s192
      %p204 = scmp.eq.s32.totalorder %s35, 1
      %p205 = por %p203, %p204
      %p207 = scmp.ne.s32.totalorder %s192, %s206
      %p208 = scmp.eq.s32.totalorder %s35, 0
      %p209 = por %p207, %p208
      %s211 = sadd.s32 %s210, 1
      %p214 = scmp.eq.s32.totalorder %s29, 1
      %p215 = scmp.ne.s32.totalorder %s210, %s212
      %p216 = scmp.eq.s32.totalorder %s29, 0
      %p217 = por %p215, %p216
      %p218 = scmp.ne.s32.totalorder %s210, %s212
      %p219 = scmp.eq.s32.totalorder %s34, 1
      %p220 = por %p218, %p219
      %p221 = scmp.ne.s32.totalorder %s212, %s213
      %p222 = scmp.eq.s32.totalorder %s34, 0
      %p223 = por %p221, %p222
      %p224 = scmp.ne.s32.totalorder %s212, %s213
      %p225 = scmp.eq.s32.totalorder %s35, 1
      %p226 = por %p224, %p225
      %p228 = scmp.ne.s32.totalorder %s213, %s227
      %p229 = scmp.eq.s32.totalorder %s35, 0
      %p230 = por %p228, %p229
      %s232 = sadd.s32 %s231, 1
      %p235 = scmp.eq.s32.totalorder %s29, 1
      %p236 = scmp.ne.s32.totalorder %s231, %s233
      %p237 = scmp.eq.s32.totalorder %s29, 0
      %p238 = por %p236, %p237
      %p239 = scmp.ne.s32.totalorder %s231, %s233
      %p240 = scmp.eq.s32.totalorder %s34, 1
      %p241 = por %p239, %p240
      %p242 = scmp.ne.s32.totalorder %s233, %s234
      %p243 = scmp.eq.s32.totalorder %s34, 0
      %p244 = por %p242, %p243
      %p245 = scmp.ne.s32.totalorder %s233, %s234
      %p246 = scmp.eq.s32.totalorder %s35, 1
      %p247 = por %p245, %p246
      %p249 = scmp.ne.s32.totalorder %s234, %s248
      %p250 = scmp.eq.s32.totalorder %s35, 0
      %p251 = por %p249, %p250
      %s253 = sadd.s32 %s252, 1
      %p256 = scmp.eq.s32.totalorder %s29, 1
      %p257 = scmp.ne.s32.totalorder %s252, %s254
      %p258 = scmp.eq.s32.totalorder %s29, 0
      %p259 = por %p257, %p258
      %p260 = scmp.ne.s32.totalorder %s252, %s254
      %p261 = scmp.eq.s32.totalorder %s34, 1
      %p262 = por %p260, %p261
      %p263 = scmp.ne.s32.totalorder %s254, %s255
      %p264 = scmp.eq.s32.totalorder %s34, 0
      %p265 = por %p263, %p264
      %p266 = scmp.ne.s32.totalorder %s254, %s255
      %p267 = scmp.eq.s32.totalorder %s35, 1
      %p268 = por %p266, %p267
      %p270 = scmp.ne.s32.totalorder %s255, %s269
      %p271 = scmp.eq.s32.totalorder %s35, 0
      %p272 = por %p270, %p271
      %s274 = sadd.s32 %s273, 1
      %p277 = scmp.eq.s32.totalorder %s29, 1
      %p278 = scmp.ne.s32.totalorder %s273, %s275
      %p279 = scmp.eq.s32.totalorder %s29, 0
      %p280 = por %p278, %p279
      %p281 = scmp.ne.s32.totalorder %s273, %s275
      %p282 = scmp.eq.s32.totalorder %s34, 1
      %p283 = por %p281, %p282
      %p284 = scmp.ne.s32.totalorder %s275, %s276
      %p285 = scmp.eq.s32.totalorder %s34, 0
      %p286 = por %p284, %p285
      %p287 = scmp.ne.s32.totalorder %s275, %s276
      %p288 = scmp.eq.s32.totalorder %s35, 1
      %p289 = por %p287, %p288
      %p291 = scmp.ne.s32.totalorder %s276, %s290
      %p292 = scmp.eq.s32.totalorder %s35, 0
      %p293 = por %p291, %p292
      %s295 = sadd.s32 %s294, 1
      %p298 = scmp.eq.s32.totalorder %s29, 1
      %p299 = scmp.ne.s32.totalorder %s294, %s296
      %p300 = scmp.eq.s32.totalorder %s29, 0
      %p301 = por %p299, %p300
      %p302 = scmp.ne.s32.totalorder %s294, %s296
      %p303 = scmp.eq.s32.totalorder %s34, 1
      %p304 = por %p302, %p303
      %p305 = scmp.ne.s32.totalorder %s296, %s297
      %p306 = scmp.eq.s32.totalorder %s34, 0
      %p307 = por %p305, %p306
      %p308 = scmp.ne.s32.totalorder %s296, %s297
      %p309 = scmp.eq.s32.totalorder %s35, 1
      %p310 = por %p308, %p309
      %p312 = scmp.ne.s32.totalorder %s297, %s311
      %p313 = scmp.eq.s32.totalorder %s35, 0
      %p314 = por %p312, %p313
      %s315 = ssub.s32 %s29, %s36
      %p316 = scmp.eq.s32.totalorder %s315, 0
      %s318 = sadd.s32 %s317, 1
      %s319 = scalar_select %p316, %s317, %s318
      %p322 = pneg %p316
      %p323 = scmp.eq.s32.totalorder %s29, 1
      %p324 = por %p322, %p323
      %p325 = scmp.ne.s32.totalorder %s317, %s320
      %p326 = scmp.eq.s32.totalorder %s29, 0
      %p327 = por %p325, %p326
      %p328 = scmp.ne.s32.totalorder %s317, %s320
      %p329 = scmp.eq.s32.totalorder %s34, 1
      %p330 = por %p328, %p329
      %p331 = scmp.ne.s32.totalorder %s320, %s321
      %p332 = scmp.eq.s32.totalorder %s34, 0
      %p333 = por %p331, %p332
      %p334 = scmp.ne.s32.totalorder %s320, %s321
      %p335 = scmp.eq.s32.totalorder %s35, 1
      %p336 = por %p334, %p335
      %p338 = scmp.ne.s32.totalorder %s321, %s337
      %p339 = scmp.eq.s32.totalorder %s35, 0
      %p340 = por %p338, %p339
      %p341 = scmp.le.s32.totalorder 1, %s29
      %p342 = scmp.lt.s32.totalorder %s29, 3
      %p343 = pnand %p341, %p342
      %p344 = pneg %p343
      // Predicated region
      $region9: #{tpu_custom_call.1} parent=5 // pred_check
        _
      $region10: #{tpu_custom_call.1} parent=5 // pred_check_branch
        %346 = sbr.rel (%p343) target = $region12
      $region11: #{tpu_custom_call.1} parent=5 // pred_region
        %s347 = ssub.s32 %s29, 1
        // Predicated region
        $region13: #{tpu_custom_call.1} parent=11 // pred_check
          %p348 = pneg %p76
        $region14: #{tpu_custom_call.1} parent=11 // pred_check_branch
          %350 = sbr.rel (%p348) target = $region16
        $region15: #{tpu_custom_call.1} parent=11 // pred_region
          %352 = vsyncadd [#allocation7], 0
          %s354 = sshll.u32 %s1, 4
          %s355 = int_to_ptr.hbm [resolvable:$true] %s354
          %s356 = sshll.u32 [#allocation6], 4
          %s357 = int_to_ptr.vmem [resolvable:$true] %s356
          %359 = dma.hbm_to_vmem [thread:$0]  %s355, 16, %s357, [#allocation7]
        $region16: #{tpu_custom_call.1} parent=11 // pred_fallthru
          _
        // Predicated region
        $region17: #{tpu_custom_call.1} parent=11 // pred_check
          %p360 = pneg %p97
        $region18: #{tpu_custom_call.1} parent=11 // pred_check_branch
          %362 = sbr.rel (%p360) target = $region20
        $region19: #{tpu_custom_call.1} parent=11 // pred_region
          %364 = vsyncadd [#allocation7], 0
          %s366 = sshll.u32 %s2, 4
          %s367 = int_to_ptr.hbm [resolvable:$true] %s366
          %s368 = sshll.u32 [#allocation8], 4
          %s369 = int_to_ptr.vmem [resolvable:$true] %s368
          %371 = dma.hbm_to_vmem [thread:$0]  %s367, 16, %s369, [#allocation7]
        $region20: #{tpu_custom_call.1} parent=11 // pred_fallthru
          _
        // Predicated region
        $region21: #{tpu_custom_call.1} parent=11 // pred_check
          %p372 = pneg %p118
        $region22: #{tpu_custom_call.1} parent=11 // pred_check_branch
          %374 = sbr.rel (%p372) target = $region24
        $region23: #{tpu_custom_call.1} parent=11 // pred_region
          %376 = vsyncadd [#allocation10], 0
          %s377 = sshll.u32 %s3, 4
          %s378 = int_to_ptr.hbm [resolvable:$true] %s377
          %s379 = sshll.u32 [#allocation9], 4
          %s380 = int_to_ptr.vmem [resolvable:$true] %s379
          %385 = dma.hbm_to_vmem [thread:$0]  %s378, 6144, %s380, [#allocation10], 384, 384, 24
        $region24: #{tpu_custom_call.1} parent=11 // pred_fallthru
          _
        // Predicated region
        $region25: #{tpu_custom_call.1} parent=11 // pred_check
          %p386 = pneg %p139
        $region26: #{tpu_custom_call.1} parent=11 // pred_check_branch
          %388 = sbr.rel (%p386) target = $region28
        $region27: #{tpu_custom_call.1} parent=11 // pred_region
          _
        $region28: #{tpu_custom_call.1} parent=11 // pred_fallthru
          _
        // Predicated region
        $region29: #{tpu_custom_call.1} parent=11 // pred_check
          %p389 = pneg %p160
        $region30: #{tpu_custom_call.1} parent=11 // pred_check_branch
          %391 = sbr.rel (%p389) target = $region32
        $region31: #{tpu_custom_call.1} parent=11 // pred_region
          %393 = vsyncadd [#allocation10], 0
          %s394 = sshll.u32 %s5, 4
          %s395 = int_to_ptr.hbm [resolvable:$true] %s394
          %s396 = sshll.u32 [#allocation11], 4
          %s397 = int_to_ptr.vmem [resolvable:$true] %s396
          %402 = dma.hbm_to_vmem [thread:$0]  %s395, 2048, %s397, [#allocation10], 128, 128, 8
        $region32: #{tpu_custom_call.1} parent=11 // pred_fallthru
          _
        // Predicated region
        $region33: #{tpu_custom_call.1} parent=11 // pred_check
          %p403 = pneg %p181
        $region34: #{tpu_custom_call.1} parent=11 // pred_check_branch
          %405 = sbr.rel (%p403) target = $region36
        $region35: #{tpu_custom_call.1} parent=11 // pred_region
          %407 = vsyncadd [#allocation13], 0
          %s409 = sshll.u32 %s6, 4
          %s410 = int_to_ptr.hbm [resolvable:$true] %s409
          %s411 = sshll.u32 [#allocation12], 4
          %s412 = int_to_ptr.vmem [resolvable:$true] %s411
          %414 = dma.hbm_to_vmem [thread:$0]  %s410, 16, %s412, [#allocation13]
        $region36: #{tpu_custom_call.1} parent=11 // pred_fallthru
          _
        // Predicated region
        $region37: #{tpu_custom_call.1} parent=11 // pred_check
          %p415 = pneg %p202
        $region38: #{tpu_custom_call.1} parent=11 // pred_check_branch
          %417 = sbr.rel (%p415) target = $region40
        $region39: #{tpu_custom_call.1} parent=11 // pred_region
          _
        $region40: #{tpu_custom_call.1} parent=11 // pred_fallthru
          _
        // Predicated region
        $region41: #{tpu_custom_call.1} parent=11 // pred_check
          %p418 = pneg %p223
        $region42: #{tpu_custom_call.1} parent=11 // pred_check_branch
          %420 = sbr.rel (%p418) target = $region44
        $region43: #{tpu_custom_call.1} parent=11 // pred_region
          _
        $region44: #{tpu_custom_call.1} parent=11 // pred_fallthru
          _
        // Predicated region
        $region45: #{tpu_custom_call.1} parent=11 // pred_check
          %p421 = pneg %p244
        $region46: #{tpu_custom_call.1} parent=11 // pred_check_branch
          %423 = sbr.rel (%p421) target = $region48
        $region47: #{tpu_custom_call.1} parent=11 // pred_region
          %425 = vsyncadd [#allocation13], 0
          %s426 = sshll.u32 %s9, 4
          %s427 = int_to_ptr.hbm [resolvable:$true] %s426
          %s428 = sshll.u32 [#allocation14], 4
          %s429 = int_to_ptr.vmem [resolvable:$true] %s428
          %434 = dma.hbm_to_vmem [thread:$0]  %s427, 4096, %s429, [#allocation13], 256, 256, 16
        $region48: #{tpu_custom_call.1} parent=11 // pred_fallthru
          _
        // Predicated region
        $region49: #{tpu_custom_call.1} parent=11 // pred_check
          %p435 = pneg %p265
        $region50: #{tpu_custom_call.1} parent=11 // pred_check_branch
          %437 = sbr.rel (%p435) target = $region52
        $region51: #{tpu_custom_call.1} parent=11 // pred_region
          _
        $region52: #{tpu_custom_call.1} parent=11 // pred_fallthru
          _
        // Predicated region
        $region53: #{tpu_custom_call.1} parent=11 // pred_check
          %p438 = pneg %p286
        $region54: #{tpu_custom_call.1} parent=11 // pred_check_branch
          %440 = sbr.rel (%p438) target = $region56
        $region55: #{tpu_custom_call.1} parent=11 // pred_region
          %442 = vsyncadd [#allocation16], 0
          %s443 = sshll.u32 %s11, 4
          %s444 = int_to_ptr.hbm [resolvable:$true] %s443
          %s445 = sshll.u32 [#allocation15], 4
          %s446 = int_to_ptr.vmem [resolvable:$true] %s445
          %451 = dma.hbm_to_vmem [thread:$0]  %s444, 4096, %s446, [#allocation16], 128, 128, 8
        $region56: #{tpu_custom_call.1} parent=11 // pred_fallthru
          _
        // Predicated region
        $region57: #{tpu_custom_call.1} parent=11 // pred_check
          %p452 = pneg %p307
        $region58: #{tpu_custom_call.1} parent=11 // pred_check_branch
          %454 = sbr.rel (%p452) target = $region60
        $region59: #{tpu_custom_call.1} parent=11 // pred_region
          _
        $region60: #{tpu_custom_call.1} parent=11 // pred_fallthru
          _
      $region12: #{tpu_custom_call.1} parent=5 // pred_fallthru
        _
      %p455 = scmp.lt.s32.totalorder %s29, 2
      // Predicated region
      $region61: #{tpu_custom_call.1} parent=5 // pred_check
        %p456 = pneg %p455
      $region62: #{tpu_custom_call.1} parent=5 // pred_check_branch
        %458 = sbr.rel (%p456) target = $region64
      $region63: #{tpu_custom_call.1} parent=5 // pred_region
        // Predicated region
        $region65: #{tpu_custom_call.1} parent=63 // pred_check
          %p459 = pneg %p49
        $region66: #{tpu_custom_call.1} parent=63 // pred_check_branch
          %461 = sbr.rel (%p459) target = $region68
        $region67: #{tpu_custom_call.1} parent=63 // pred_region
          %s462 = sand.u32 %s39, 1
          %s463 = scalar_lea.sflag [#allocation4], %s462
          %s464 = sand.u32 %s39, 1
          %s465 = smul.addr %s464, 16
          %s466 = scalar_lea.vmem [#allocation3], %s465
          %468 = vsyncadd %s463, 0
          %s469 = smul.addr %s29, 2
          %s470 = smul.addr %s469, 8
          %s471 = scalar_lea.hbm %s0, %s470
          %s472 = sshll.u32 %s471, 4
          %s473 = int_to_ptr.hbm [resolvable:$true] %s472
          %s474 = sshll.u32 %s466, 4
          %s475 = int_to_ptr.vmem [resolvable:$true] %s474
          %480 = dma.hbm_to_vmem [thread:$0]  %s473, 256, %s475, %s463, 128, 128, 8
        $region68: #{tpu_custom_call.1} parent=63 // pred_fallthru
          _
      $region64: #{tpu_custom_call.1} parent=5 // pred_fallthru
        _
      %p481 = scmp.le.s32.totalorder 1, %s29
      %p482 = scmp.lt.s32.totalorder %s29, 3
      %p483 = pnand %p481, %p482
      %p484 = pneg %p483
      // Predicated region
      $region69: #{tpu_custom_call.1} parent=5 // pred_check
        _
      $region70: #{tpu_custom_call.1} parent=5 // pred_check_branch
        %486 = sbr.rel (%p483) target = $region72
      $region71: #{tpu_custom_call.1} parent=5 // pred_region
        %s487 = ssub.s32 %s29, 1
        %s488 = sand.u32 %s42, 1
        %s489 = scalar_lea.sflag [#allocation4], %s488
        %s490 = sand.u32 %s42, 1
        %s491 = smul.addr %s490, 16
        %s492 = scalar_lea.vmem [#allocation3], %s491
        // Predicated region
        $region73: #{tpu_custom_call.1} parent=71 // pred_check
          %p493 = pneg %p55
        $region74: #{tpu_custom_call.1} parent=71 // pred_check_branch
          %495 = sbr.rel (%p493) target = $region76
        $region75: #{tpu_custom_call.1} parent=71 // pred_region
          %497 = dma.done %s489, 256
        $region76: #{tpu_custom_call.1} parent=71 // pred_fallthru
          _
        // Predicated region
        $region77: #{tpu_custom_call.1} parent=71 // pred_check
          %p498 = pneg %p76
        $region78: #{tpu_custom_call.1} parent=71 // pred_check_branch
          %500 = sbr.rel (%p498) target = $region80
        $region79: #{tpu_custom_call.1} parent=71 // pred_region
          %502 = dma.done [#allocation7], 16
        $region80: #{tpu_custom_call.1} parent=71 // pred_fallthru
          _
        // Predicated region
        $region81: #{tpu_custom_call.1} parent=71 // pred_check
          %p503 = pneg %p97
        $region82: #{tpu_custom_call.1} parent=71 // pred_check_branch
          %505 = sbr.rel (%p503) target = $region84
        $region83: #{tpu_custom_call.1} parent=71 // pred_region
          %507 = dma.done [#allocation7], 16
        $region84: #{tpu_custom_call.1} parent=71 // pred_fallthru
          _
        // Predicated region
        $region85: #{tpu_custom_call.1} parent=71 // pred_check
          %p508 = pneg %p118
        $region86: #{tpu_custom_call.1} parent=71 // pred_check_branch
          %510 = sbr.rel (%p508) target = $region88
        $region87: #{tpu_custom_call.1} parent=71 // pred_region
          %512 = dma.done [#allocation10], 6144
        $region88: #{tpu_custom_call.1} parent=71 // pred_fallthru
          _
        // Predicated region
        $region89: #{tpu_custom_call.1} parent=71 // pred_check
          %p513 = pneg %p160
        $region90: #{tpu_custom_call.1} parent=71 // pred_check_branch
          %515 = sbr.rel (%p513) target = $region92
        $region91: #{tpu_custom_call.1} parent=71 // pred_region
          %517 = dma.done [#allocation10], 2048
        $region92: #{tpu_custom_call.1} parent=71 // pred_fallthru
          _
        // Predicated region
        $region93: #{tpu_custom_call.1} parent=71 // pred_check
          %p518 = pneg %p181
        $region94: #{tpu_custom_call.1} parent=71 // pred_check_branch
          %520 = sbr.rel (%p518) target = $region96
        $region95: #{tpu_custom_call.1} parent=71 // pred_region
          %522 = dma.done [#allocation13], 16
        $region96: #{tpu_custom_call.1} parent=71 // pred_fallthru
          _
        // Predicated region
        $region97: #{tpu_custom_call.1} parent=71 // pred_check
          %p523 = pneg %p244
        $region98: #{tpu_custom_call.1} parent=71 // pred_check_branch
          %525 = sbr.rel (%p523) target = $region100
        $region99: #{tpu_custom_call.1} parent=71 // pred_region
          %527 = dma.done [#allocation13], 4096
        $region100: #{tpu_custom_call.1} parent=71 // pred_fallthru
          _
        // Predicated region
        $region101: #{tpu_custom_call.1} parent=71 // pred_check
          %p528 = pneg %p286
        $region102: #{tpu_custom_call.1} parent=71 // pred_check_branch
          %530 = sbr.rel (%p528) target = $region104
        $region103: #{tpu_custom_call.1} parent=71 // pred_region
          %532 = dma.done [#allocation16], 4096
        $region104: #{tpu_custom_call.1} parent=71 // pred_fallthru
          _
        %s533 = sand.u32 %s42, 1
        %s534 = scalar_lea.sflag [#allocation4], %s533
        %s535 = sand.u32 %s42, 1
        %s536 = smul.addr %s535, 16
        %s537 = scalar_lea.vmem [#allocation3], %s536
        %p538 = pneg %p55
        %p539 = pneg %p52
        %p540 = pneg %p76
        %p541 = pneg %p73
        %p542 = pneg %p97
        %p543 = pneg %p94
        %p544 = pneg %p118
        %p545 = pneg %p115
        %p546 = pneg %p139
        %p547 = pneg %p136
        %p548 = pneg %p160
        %p549 = pneg %p157
        %p550 = pneg %p181
        %p551 = pneg %p178
        %p552 = pneg %p202
        %p553 = pneg %p199
        %p554 = pneg %p223
        %p555 = pneg %p220
        %p556 = pneg %p244
        %p557 = pneg %p241
        %p558 = pneg %p265
        %p559 = pneg %p262
        %p560 = pneg %p286
        %p561 = pneg %p283
        %p562 = pneg %p307
        %p563 = pneg %p304
        %p564 = pneg %p333
        %p565 = pneg %p330
        %s566 = sand.u32 %s320, 1
        %s567 = scalar_lea.sflag [#allocation5], %s566
        %s568 = sand.u32 %s320, 1
        %s569 = smul.addr %s568, 16
        %s570 = scalar_lea.vmem [#allocation17], %s569
        %v571 = vld [vmem:[%s492] sm:$0xff]
        %v572 = vld [vmem:[%s492 + $0x8] sm:$0xff]
        %v573 = vld [vmem:[#allocation6] sm:$0x1]
        %v574 = vld [vmem:[#allocation8] sm:$0x1]
        %575 = vadd.xlane.f32.xlu0 %v571
        %v576 = vpop.xlane.xlu0 %575
        %577 = vadd.xlane.f32.xlu0 %v572
        %v578 = vpop.xlane.xlu0 %577
        %v579 = vrcp.pop 128.0
        %v580 = vmul.f32 128.0, %v579
        %v581 = vsub.f32 1.0, %v580
        %v582 = vmul.f32 %v579, %v581
        %v583 = vadd.f32 %v579, %v582
        %vm584 = vweird.f32 %v579
        %v585 = vsel %vm584, %v579, %v583
        %v586 = vmul.f32 %v576, %v585
        %v587 = vmul.f32 %v578, %v585
        %v588 = vsub.f32 %v571, %v586
        %v589 = vsub.f32 %v572, %v587
        %v590 = vmul.f32 %v588, %v588
        %v591 = vmul.f32 %v589, %v589
        %592 = vadd.xlane.f32.xlu0 %v590
        %v593 = vpop.xlane.xlu0 %592
        %594 = vadd.xlane.f32.xlu0 %v591
        %v595 = vpop.xlane.xlu0 %594
        %v596 = vmul.f32 %v593, %v585
        %v597 = vmul.f32 %v595, %v585
        %v598 = vadd.f32 %v596, 1e-05
        %v599 = vadd.f32 %v597, 1e-05
        %v600 = vrsqrt.pop %v598
        %v601 = vmul.f32 %v600, %v598
        %v602 = vmul.f32 %v601, %v600
        %v603 = vmul.f32 0.5, %v602
        %v604 = vsub.f32 1.5, %v603
        %v605 = vmul.f32 %v600, %v604
        %vm606 = vweird.f32 %v598
        %vm607 = vweird.f32 %v600
        %vm608 = vmor %vm606, %vm607
        %v609 = vsel %vm608, %v600, %v605
        %v610 = vrsqrt.pop %v599
        %v611 = vmul.f32 %v610, %v599
        %v612 = vmul.f32 %v611, %v610
        %v613 = vmul.f32 0.5, %v612
        %v614 = vsub.f32 1.5, %v613
        %v615 = vmul.f32 %v610, %v614
        %vm616 = vweird.f32 %v599
        %vm617 = vweird.f32 %v610
        %vm618 = vmor %vm616, %vm617
        %v619 = vsel %vm618, %v610, %v615
        %v620 = vmul.f32 %v588, %v609
        %v621 = vmul.f32 %v589, %v619
        %v623 = vperm.slane %v573, 0
        %v625 = vmul.f32 %v620, %v623
        %v626 = vmul.f32 %v621, %v623
        %v628 = vperm.slane %v574, 0
        %v630 = vadd.f32 %v625, %v628
        %v631 = vadd.f32 %v626, %v628
        %v632 = vld [vmem:[#allocation9] sm:$0xff]
        %v633 = vld [vmem:[#allocation9 + $0x8] sm:$0xff]
        %v634 = vld [vmem:[#allocation9 + $0x10] sm:$0xff]
        %v635 = vld [vmem:[#allocation9 + $0x18] sm:$0xff]
        %v636 = vld [vmem:[#allocation9 + $0x20] sm:$0xff]
        %v637 = vld [vmem:[#allocation9 + $0x28] sm:$0xff]
        %v638 = vld [vmem:[#allocation9 + $0x30] sm:$0xff]
        %v639 = vld [vmem:[#allocation9 + $0x38] sm:$0xff]
        %v640 = vld [vmem:[#allocation9 + $0x40] sm:$0xff]
        %v641 = vld [vmem:[#allocation9 + $0x48] sm:$0xff]
        %v642 = vld [vmem:[#allocation9 + $0x50] sm:$0xff]
        %v643 = vld [vmem:[#allocation9 + $0x58] sm:$0xff]
        %v644 = vld [vmem:[#allocation9 + $0x60] sm:$0xff]
        %v645 = vld [vmem:[#allocation9 + $0x68] sm:$0xff]
        %v646 = vld [vmem:[#allocation9 + $0x70] sm:$0xff]
        %v647 = vld [vmem:[#allocation9 + $0x78] sm:$0xff]
        %v648 = vld [vmem:[#allocation9 + $0x80] sm:$0xff]
        %v649 = vld [vmem:[#allocation9 + $0x88] sm:$0xff]
        %v650 = vld [vmem:[#allocation9 + $0x90] sm:$0xff]
        %v651 = vld [vmem:[#allocation9 + $0x98] sm:$0xff]
        %v652 = vld [vmem:[#allocation9 + $0xa0] sm:$0xff]
        %v653 = vld [vmem:[#allocation9 + $0xa8] sm:$0xff]
        %v654 = vld [vmem:[#allocation9 + $0xb0] sm:$0xff]
        %v655 = vld [vmem:[#allocation9 + $0xb8] sm:$0xff]
        %v656 = vld [vmem:[#allocation9 + $0xc0] sm:$0xff]
        %v657 = vld [vmem:[#allocation9 + $0xc8] sm:$0xff]
        %v658 = vld [vmem:[#allocation9 + $0xd0] sm:$0xff]
        %v659 = vld [vmem:[#allocation9 + $0xd8] sm:$0xff]
        %v660 = vld [vmem:[#allocation9 + $0xe0] sm:$0xff]
        %v661 = vld [vmem:[#allocation9 + $0xe8] sm:$0xff]
        %v662 = vld [vmem:[#allocation9 + $0xf0] sm:$0xff]
        %v663 = vld [vmem:[#allocation9 + $0xf8] sm:$0xff]
        %v664 = vld [vmem:[#allocation9 + $0x100] sm:$0xff]
        %v665 = vld [vmem:[#allocation9 + $0x108] sm:$0xff]
        %v666 = vld [vmem:[#allocation9 + $0x110] sm:$0xff]
        %v667 = vld [vmem:[#allocation9 + $0x118] sm:$0xff]
        %v668 = vld [vmem:[#allocation9 + $0x120] sm:$0xff]
        %v669 = vld [vmem:[#allocation9 + $0x128] sm:$0xff]
        %v670 = vld [vmem:[#allocation9 + $0x130] sm:$0xff]
        %v671 = vld [vmem:[#allocation9 + $0x138] sm:$0xff]
        %v672 = vld [vmem:[#allocation9 + $0x140] sm:$0xff]
        %v673 = vld [vmem:[#allocation9 + $0x148] sm:$0xff]
        %v674 = vld [vmem:[#allocation9 + $0x150] sm:$0xff]
        %v675 = vld [vmem:[#allocation9 + $0x158] sm:$0xff]
        %v676 = vld [vmem:[#allocation9 + $0x160] sm:$0xff]
        %v677 = vld [vmem:[#allocation9 + $0x168] sm:$0xff]
        %v678 = vld [vmem:[#allocation9 + $0x170] sm:$0xff]
        %v679 = vld [vmem:[#allocation9 + $0x178] sm:$0xff]
        %v680 = vld [vmem:[%s4] sm:$0x7]
        %v682 = vperm.slane %v680, 0
        %v683 = vperm.slane %v680, 1
        %v684 = vperm.slane %v680, 2
        %688 = vmatpush.msra.mxu0 %v677
        %689 = vmatpush.msra.mxu0 %v674
        %690 = vmatpush.msra.mxu0 %v671
        %691 = vmatpush.msra.mxu0 %v668
        %692 = vmatpush.msra.mxu0 %v665
        %693 = vmatpush.msra.mxu0 %v662
        %694 = vmatpush.msra.mxu0 %v659
        %695 = vmatpush.msra.mxu0 %v656
        %696 = vmatpush.msra.mxu0 %v653
        %697 = vmatpush.msra.mxu0 %v650
        %698 = vmatpush.msra.mxu0 %v647
        %699 = vmatpush.msra.mxu0 %v644
        %700 = vmatpush.msra.mxu0 %v641
        %701 = vmatpush.msra.mxu0 %v638
        %702 = vmatpush.msra.mxu0 %v635
        %703 = vmatpush.msra.mxu0 %v632
        %704 = vmatmul.f32.gmra.mxu0 %v630
        %v705 = vpop.f32.mrf.mxu0
        %v706 = vadd.f32 %v682, %v705
        %707 = vmatmul.f32.gmra.mxu0 %v631
        %v708 = vpop.f32.mrf.mxu0
        %v709 = vadd.f32 %v682, %v708
        %710 = vdwg.mxu0
        %711 = vmatpush.msra.mxu0 %v678
        %712 = vmatpush.msra.mxu0 %v675
        %713 = vmatpush.msra.mxu0 %v672
        %714 = vmatpush.msra.mxu0 %v669
        %715 = vmatpush.msra.mxu0 %v666
        %716 = vmatpush.msra.mxu0 %v663
        %717 = vmatpush.msra.mxu0 %v660
        %718 = vmatpush.msra.mxu0 %v657
        %719 = vmatpush.msra.mxu0 %v654
        %720 = vmatpush.msra.mxu0 %v651
        %721 = vmatpush.msra.mxu0 %v648
        %722 = vmatpush.msra.mxu0 %v645
        %723 = vmatpush.msra.mxu0 %v642
        %724 = vmatpush.msra.mxu0 %v639
        %725 = vmatpush.msra.mxu0 %v636
        %726 = vmatpush.msra.mxu0 %v633
        %727 = vmatmul.f32.gmra.mxu0 %v630
        %v728 = vpop.f32.mrf.mxu0
        %v729 = vadd.f32 %v683, %v728
        %730 = vmatmul.f32.gmra.mxu0 %v631
        %v731 = vpop.f32.mrf.mxu0
        %v732 = vadd.f32 %v683, %v731
        %733 = vdwg.mxu0
        %734 = vmatpush.msra.mxu0 %v679
        %735 = vmatpush.msra.mxu0 %v676
        %736 = vmatpush.msra.mxu0 %v673
        %737 = vmatpush.msra.mxu0 %v670
        %738 = vmatpush.msra.mxu0 %v667
        %739 = vmatpush.msra.mxu0 %v664
        %740 = vmatpush.msra.mxu0 %v661
        %741 = vmatpush.msra.mxu0 %v658
        %742 = vmatpush.msra.mxu0 %v655
        %743 = vmatpush.msra.mxu0 %v652
        %744 = vmatpush.msra.mxu0 %v649
        %745 = vmatpush.msra.mxu0 %v646
        %746 = vmatpush.msra.mxu0 %v643
        %747 = vmatpush.msra.mxu0 %v640
        %748 = vmatpush.msra.mxu0 %v637
        %749 = vmatpush.msra.mxu0 %v634
        %750 = vmatmul.f32.gmra.mxu0 %v630
        %v751 = vpop.f32.mrf.mxu0
        %v752 = vadd.f32 %v684, %v751
        %753 = vmatmul.f32.gmra.mxu0 %v631
        %v754 = vpop.f32.mrf.mxu0
        %v755 = vadd.f32 %v684, %v754
        %756 = vdwg.mxu0
        %v757 = vmul.f32 %v706, 0.17677669
        %v758 = vmul.f32 %v709, 0.17677669
        %vm759 = vcmask 261120
        %v761 = vsel %vm759, %v757, 0
        %v764 = vsel %vm759, %v758, 0
        %v767 = vsel %vm759, %v729, 0
        %v770 = vsel %vm759, %v732, 0
        %772 = vmatpush.xpose.msra.mxu0 0.0
        %773 = vmatpush.xpose.msra.mxu0 0.0
        %774 = vmatpush.xpose.msra.mxu0 0.0
        %775 = vmatpush.xpose.msra.mxu0 0.0
        %776 = vmatpush.xpose.msra.mxu0 0.0
        %777 = vmatpush.xpose.msra.mxu0 0.0
        %778 = vmatpush.xpose.msra.mxu0 0.0
        %779 = vmatpush.xpose.msra.mxu0 0.0
        %780 = vmatpush.xpose.msra.mxu0 0.0
        %781 = vmatpush.xpose.msra.mxu0 0.0
        %782 = vmatpush.xpose.msra.mxu0 0.0
        %783 = vmatpush.xpose.msra.mxu0 0.0
        %784 = vmatpush.xpose.msra.mxu0 0.0
        %785 = vmatpush.xpose.msra.mxu0 0.0
        %786 = vmatpush.xpose.msra.mxu0 %v770
        %787 = vmatpush.xpose.msra.mxu0 %v767
        %788 = vmatmul.f32.gmra.mxu0 %v761
        %v789 = vpop.f32.mrf.mxu0
        %v790 = vadd.f32 0.0, %v789
        %791 = vmatmul.f32.gmra.mxu0 %v764
        %v792 = vpop.f32.mrf.mxu0
        %v793 = vadd.f32 0.0, %v792
        %794 = vdwg.mxu0
        %vm795 = vcmask 130048
        %v796 = vsel %vm795, %v790, -inf
        %797 = vmax.xlane.f32.xlu0 %v796
        %v798 = vpop.xlane.xlu0 %797
        %v799 = vsel %vm795, %v793, -inf
        %800 = vmax.xlane.f32.xlu0 %v799
        %v801 = vpop.xlane.xlu0 %800
        %v802 = vsub.f32 %v790, %v798
        %v803 = vsub.f32 %v793, %v801
        %v804 = vmul.f32 %v802, 1.442695
        %v805 = vpow.pop %v804
        %v806 = vmul.f32 %v803, 1.442695
        %v807 = vpow.pop %v806
        %v808 = vsel %vm795, %v805, 0.0
        %809 = vadd.xlane.f32.xlu0 %v808
        %v810 = vpop.xlane.xlu0 %809
        %v811 = vsel %vm795, %v807, 0.0
        %812 = vadd.xlane.f32.xlu0 %v811
        %v813 = vpop.xlane.xlu0 %812
        %v814 = vrcp.pop %v810
        %v815 = vrcp.pop %v813
        %v816 = vmul.f32 %v805, %v814
        %v817 = vmul.f32 %v807, %v815
        %v819 = vsel %vm795, %v816, 0
        %v822 = vsel %vm795, %v817, 0
        %824 = vmatpush.msra.mxu0 0.0
        %825 = vmatpush.msra.mxu0 0.0
        %826 = vmatpush.msra.mxu0 0.0
        %827 = vmatpush.msra.mxu0 0.0
        %828 = vmatpush.msra.mxu0 0.0
        %829 = vmatpush.msra.mxu0 0.0
        %830 = vmatpush.msra.mxu0 0.0
        %831 = vmatpush.msra.mxu0 0.0
        %832 = vmatpush.msra.mxu0 0.0
        %833 = vmatpush.msra.mxu0 0.0
        %834 = vmatpush.msra.mxu0 0.0
        %835 = vmatpush.msra.mxu0 0.0
        %836 = vmatpush.msra.mxu0 0.0
        %837 = vmatpush.msra.mxu0 0.0
        %838 = vmatpush.msra.mxu0 %v755
        %839 = vmatpush.msra.mxu0 %v752
        %840 = vmatmul.f32.gmra.mxu0 %v819
        %v841 = vpop.f32.mrf.mxu0
        %v842 = vadd.f32 0.0, %v841
        %843 = vmatmul.f32.gmra.mxu0 %v822
        %v844 = vpop.f32.mrf.mxu0
        %v845 = vadd.f32 0.0, %v844
        %846 = vdwg.mxu0
        %847 = vst.msk [vmem:[#allocation2] sm:$0xff] %vm759, %v842
        %848 = vst.msk [vmem:[#allocation2 + $0x8] sm:$0xff] %vm759, %v845
        %849 = vrot.lane.b32.xlu0 %v757, 96
        %v850 = vpop.permute.xlu0 %849
        %851 = vrot.lane.b32.xlu0 %v758, 96
        %v852 = vpop.permute.xlu0 %851
        %853 = vrot.lane.b32.xlu0 %v729, 96
        %v854 = vpop.permute.xlu0 %853
        %855 = vrot.lane.b32.xlu0 %v732, 96
        %v856 = vpop.permute.xlu0 %855
        %v857 = vsel %vm759, %v850, 0
        %v859 = vsel %vm759, %v852, 0
        %v861 = vsel %vm759, %v854, 0
        %v863 = vsel %vm759, %v856, 0
        %865 = vmatpush.xpose.msra.mxu0 0.0
        %866 = vmatpush.xpose.msra.mxu0 0.0
        %867 = vmatpush.xpose.msra.mxu0 0.0
        %868 = vmatpush.xpose.msra.mxu0 0.0
        %869 = vmatpush.xpose.msra.mxu0 0.0
        %870 = vmatpush.xpose.msra.mxu0 0.0
        %871 = vmatpush.xpose.msra.mxu0 0.0
        %872 = vmatpush.xpose.msra.mxu0 0.0
        %873 = vmatpush.xpose.msra.mxu0 0.0
        %874 = vmatpush.xpose.msra.mxu0 0.0
        %875 = vmatpush.xpose.msra.mxu0 0.0
        %876 = vmatpush.xpose.msra.mxu0 0.0
        %877 = vmatpush.xpose.msra.mxu0 0.0
        %878 = vmatpush.xpose.msra.mxu0 0.0
        %879 = vmatpush.xpose.msra.mxu0 %v863
        %880 = vmatpush.xpose.msra.mxu0 %v861
        %881 = vmatmul.f32.gmra.mxu0 %v857
        %v882 = vpop.f32.mrf.mxu0
        %v883 = vadd.f32 0.0, %v882
        %884 = vmatmul.f32.gmra.mxu0 %v859
        %v885 = vpop.f32.mrf.mxu0
        %v886 = vadd.f32 0.0, %v885
        %887 = vdwg.mxu0
        %v888 = vsel %vm795, %v883, -inf
        %889 = vmax.xlane.f32.xlu0 %v888
        %v890 = vpop.xlane.xlu0 %889
        %v891 = vsel %vm795, %v886, -inf
        %892 = vmax.xlane.f32.xlu0 %v891
        %v893 = vpop.xlane.xlu0 %892
        %v894 = vsub.f32 %v883, %v890
        %v895 = vsub.f32 %v886, %v893
        %v896 = vmul.f32 %v894, 1.442695
        %v897 = vpow.pop %v896
        %v898 = vmul.f32 %v895, 1.442695
        %v899 = vpow.pop %v898
        %v900 = vsel %vm795, %v897, 0.0
        %901 = vadd.xlane.f32.xlu0 %v900
        %v902 = vpop.xlane.xlu0 %901
        %v903 = vsel %vm795, %v899, 0.0
        %904 = vadd.xlane.f32.xlu0 %v903
        %v905 = vpop.xlane.xlu0 %904
        %v906 = vrcp.pop %v902
        %v907 = vrcp.pop %v905
        %v908 = vmul.f32 %v897, %v906
        %v909 = vmul.f32 %v899, %v907
        %912 = vrot.lane.b32.xlu0 %v752, 96
        %v913 = vpop.permute.xlu0 %912
        %914 = vrot.lane.b32.xlu0 %v755, 96
        %v915 = vpop.permute.xlu0 %914
        %v919 = vsel %vm795, %v908, 0
        %v922 = vsel %vm795, %v909, 0
        %924 = vmatpush.msra.mxu0 0.0
        %925 = vmatpush.msra.mxu0 0.0
        %926 = vmatpush.msra.mxu0 0.0
        %927 = vmatpush.msra.mxu0 0.0
        %928 = vmatpush.msra.mxu0 0.0
        %929 = vmatpush.msra.mxu0 0.0
        %930 = vmatpush.msra.mxu0 0.0
        %931 = vmatpush.msra.mxu0 0.0
        %932 = vmatpush.msra.mxu0 0.0
        %933 = vmatpush.msra.mxu0 0.0
        %934 = vmatpush.msra.mxu0 0.0
        %935 = vmatpush.msra.mxu0 0.0
        %936 = vmatpush.msra.mxu0 0.0
        %937 = vmatpush.msra.mxu0 0.0
        %938 = vmatpush.msra.mxu0 %v915
        %939 = vmatpush.msra.mxu0 %v913
        %940 = vmatmul.f32.gmra.mxu0 %v919
        %v941 = vpop.f32.mrf.mxu0
        %v942 = vadd.f32 0.0, %v941
        %943 = vmatmul.f32.gmra.mxu0 %v922
        %v944 = vpop.f32.mrf.mxu0
        %v945 = vadd.f32 0.0, %v944
        %946 = vdwg.mxu0
        %949 = vrot.lane.b32.xlu0 %v942, 32
        %v950 = vpop.permute.xlu0 %949
        %951 = vrot.lane.b32.xlu0 %v945, 32
        %v952 = vpop.permute.xlu0 %951
        %vm955 = vcmask 523520
        %956 = vst.msk [vmem:[#allocation2] sm:$0xff] %vm955, %v950
        %957 = vst.msk [vmem:[#allocation2 + $0x8] sm:$0xff] %vm955, %v952
        %958 = vrot.lane.b32.xlu0 %v757, 64
        %v959 = vpop.permute.xlu0 %958
        %960 = vrot.lane.b32.xlu0 %v758, 64
        %v961 = vpop.permute.xlu0 %960
        %962 = vrot.lane.b32.xlu0 %v729, 64
        %v963 = vpop.permute.xlu0 %962
        %964 = vrot.lane.b32.xlu0 %v732, 64
        %v965 = vpop.permute.xlu0 %964
        %v966 = vsel %vm759, %v959, 0
        %v968 = vsel %vm759, %v961, 0
        %v970 = vsel %vm759, %v963, 0
        %v972 = vsel %vm759, %v965, 0
        %974 = vmatpush.xpose.msra.mxu0 0.0
        %975 = vmatpush.xpose.msra.mxu0 0.0
        %976 = vmatpush.xpose.msra.mxu0 0.0
        %977 = vmatpush.xpose.msra.mxu0 0.0
        %978 = vmatpush.xpose.msra.mxu0 0.0
        %979 = vmatpush.xpose.msra.mxu0 0.0
        %980 = vmatpush.xpose.msra.mxu0 0.0
        %981 = vmatpush.xpose.msra.mxu0 0.0
        %982 = vmatpush.xpose.msra.mxu0 0.0
        %983 = vmatpush.xpose.msra.mxu0 0.0
        %984 = vmatpush.xpose.msra.mxu0 0.0
        %985 = vmatpush.xpose.msra.mxu0 0.0
        %986 = vmatpush.xpose.msra.mxu0 0.0
        %987 = vmatpush.xpose.msra.mxu0 0.0
        %988 = vmatpush.xpose.msra.mxu0 %v972
        %989 = vmatpush.xpose.msra.mxu0 %v970
        %990 = vmatmul.f32.gmra.mxu0 %v966
        %v991 = vpop.f32.mrf.mxu0
        %v992 = vadd.f32 0.0, %v991
        %993 = vmatmul.f32.gmra.mxu0 %v968
        %v994 = vpop.f32.mrf.mxu0
        %v995 = vadd.f32 0.0, %v994
        %996 = vdwg.mxu0
        %v997 = vsel %vm795, %v992, -inf
        %998 = vmax.xlane.f32.xlu0 %v997
        %v999 = vpop.xlane.xlu0 %998
        %v1000 = vsel %vm795, %v995, -inf
        %1001 = vmax.xlane.f32.xlu0 %v1000
        %v1002 = vpop.xlane.xlu0 %1001
        %v1003 = vsub.f32 %v992, %v999
        %v1004 = vsub.f32 %v995, %v1002
        %v1005 = vmul.f32 %v1003, 1.442695
        %v1006 = vpow.pop %v1005
        %v1007 = vmul.f32 %v1004, 1.442695
        %v1008 = vpow.pop %v1007
        %v1009 = vsel %vm795, %v1006, 0.0
        %1010 = vadd.xlane.f32.xlu0 %v1009
        %v1011 = vpop.xlane.xlu0 %1010
        %v1012 = vsel %vm795, %v1008, 0.0
        %1013 = vadd.xlane.f32.xlu0 %v1012
        %v1014 = vpop.xlane.xlu0 %1013
        %v1015 = vrcp.pop %v1011
        %v1016 = vrcp.pop %v1014
        %v1017 = vmul.f32 %v1006, %v1015
        %v1018 = vmul.f32 %v1008, %v1016
        %1019 = vrot.lane.b32.xlu0 %v752, 64
        %v1020 = vpop.permute.xlu0 %1019
        %1021 = vrot.lane.b32.xlu0 %v755, 64
        %v1022 = vpop.permute.xlu0 %1021
        %v1026 = vsel %vm795, %v1017, 0
        %v1029 = vsel %vm795, %v1018, 0
        %1031 = vmatpush.msra.mxu0 0.0
        %1032 = vmatpush.msra.mxu0 0.0
        %1033 = vmatpush.msra.mxu0 0.0
        %1034 = vmatpush.msra.mxu0 0.0
        %1035 = vmatpush.msra.mxu0 0.0
        %1036 = vmatpush.msra.mxu0 0.0
        %1037 = vmatpush.msra.mxu0 0.0
        %1038 = vmatpush.msra.mxu0 0.0
        %1039 = vmatpush.msra.mxu0 0.0
        %1040 = vmatpush.msra.mxu0 0.0
        %1041 = vmatpush.msra.mxu0 0.0
        %1042 = vmatpush.msra.mxu0 0.0
        %1043 = vmatpush.msra.mxu0 0.0
        %1044 = vmatpush.msra.mxu0 0.0
        %1045 = vmatpush.msra.mxu0 %v1022
        %1046 = vmatpush.msra.mxu0 %v1020
        %1047 = vmatmul.f32.gmra.mxu0 %v1026
        %v1048 = vpop.f32.mrf.mxu0
        %v1049 = vadd.f32 0.0, %v1048
        %1050 = vmatmul.f32.gmra.mxu0 %v1029
        %v1051 = vpop.f32.mrf.mxu0
        %v1052 = vadd.f32 0.0, %v1051
        %1053 = vdwg.mxu0
        %1056 = vrot.lane.b32.xlu0 %v1049, 64
        %v1057 = vpop.permute.xlu0 %1056
        %1058 = vrot.lane.b32.xlu0 %v1052, 64
        %v1059 = vpop.permute.xlu0 %1058
        %vm1062 = vcmask 785920
        %1063 = vst.msk [vmem:[#allocation2] sm:$0xff] %vm1062, %v1057
        %1064 = vst.msk [vmem:[#allocation2 + $0x8] sm:$0xff] %vm1062, %v1059
        %1065 = vrot.lane.b32.xlu0 %v757, 32
        %v1066 = vpop.permute.xlu0 %1065
        %1067 = vrot.lane.b32.xlu0 %v758, 32
        %v1068 = vpop.permute.xlu0 %1067
        %1069 = vrot.lane.b32.xlu0 %v729, 32
        %v1070 = vpop.permute.xlu0 %1069
        %1071 = vrot.lane.b32.xlu0 %v732, 32
        %v1072 = vpop.permute.xlu0 %1071
        %v1073 = vsel %vm759, %v1066, 0
        %v1075 = vsel %vm759, %v1068, 0
        %v1077 = vsel %vm759, %v1070, 0
        %v1079 = vsel %vm759, %v1072, 0
        %1081 = vmatpush.xpose.msra.mxu0 0.0
        %1082 = vmatpush.xpose.msra.mxu0 0.0
        %1083 = vmatpush.xpose.msra.mxu0 0.0
        %1084 = vmatpush.xpose.msra.mxu0 0.0
        %1085 = vmatpush.xpose.msra.mxu0 0.0
        %1086 = vmatpush.xpose.msra.mxu0 0.0
        %1087 = vmatpush.xpose.msra.mxu0 0.0
        %1088 = vmatpush.xpose.msra.mxu0 0.0
        %1089 = vmatpush.xpose.msra.mxu0 0.0
        %1090 = vmatpush.xpose.msra.mxu0 0.0
        %1091 = vmatpush.xpose.msra.mxu0 0.0
        %1092 = vmatpush.xpose.msra.mxu0 0.0
        %1093 = vmatpush.xpose.msra.mxu0 0.0
        %1094 = vmatpush.xpose.msra.mxu0 0.0
        %1095 = vmatpush.xpose.msra.mxu0 %v1079
        %1096 = vmatpush.xpose.msra.mxu0 %v1077
        %1097 = vmatmul.f32.gmra.mxu0 %v1073
        %v1098 = vpop.f32.mrf.mxu0
        %v1099 = vadd.f32 0.0, %v1098
        %1100 = vmatmul.f32.gmra.mxu0 %v1075
        %v1101 = vpop.f32.mrf.mxu0
        %v1102 = vadd.f32 0.0, %v1101
        %1103 = vdwg.mxu0
        %v1104 = vsel %vm795, %v1099, -inf
        %1105 = vmax.xlane.f32.xlu0 %v1104
        %v1106 = vpop.xlane.xlu0 %1105
        %v1107 = vsel %vm795, %v1102, -inf
        %1108 = vmax.xlane.f32.xlu0 %v1107
        %v1109 = vpop.xlane.xlu0 %1108
        %v1110 = vsub.f32 %v1099, %v1106
        %v1111 = vsub.f32 %v1102, %v1109
        %v1112 = vmul.f32 %v1110, 1.442695
        %v1113 = vpow.pop %v1112
        %v1114 = vmul.f32 %v1111, 1.442695
        %v1115 = vpow.pop %v1114
        %v1116 = vsel %vm795, %v1113, 0.0
        %1117 = vadd.xlane.f32.xlu0 %v1116
        %v1118 = vpop.xlane.xlu0 %1117
        %v1119 = vsel %vm795, %v1115, 0.0
        %1120 = vadd.xlane.f32.xlu0 %v1119
        %v1121 = vpop.xlane.xlu0 %1120
        %v1122 = vrcp.pop %v1118
        %v1123 = vrcp.pop %v1121
        %v1124 = vmul.f32 %v1113, %v1122
        %v1125 = vmul.f32 %v1115, %v1123
        %1126 = vrot.lane.b32.xlu0 %v752, 32
        %v1127 = vpop.permute.xlu0 %1126
        %1128 = vrot.lane.b32.xlu0 %v755, 32
        %v1129 = vpop.permute.xlu0 %1128
        %v1133 = vsel %vm795, %v1124, 0
        %v1136 = vsel %vm795, %v1125, 0
        %1138 = vmatpush.msra.mxu0 0.0
        %1139 = vmatpush.msra.mxu0 0.0
        %1140 = vmatpush.msra.mxu0 0.0
        %1141 = vmatpush.msra.mxu0 0.0
        %1142 = vmatpush.msra.mxu0 0.0
        %1143 = vmatpush.msra.mxu0 0.0
        %1144 = vmatpush.msra.mxu0 0.0
        %1145 = vmatpush.msra.mxu0 0.0
        %1146 = vmatpush.msra.mxu0 0.0
        %1147 = vmatpush.msra.mxu0 0.0
        %1148 = vmatpush.msra.mxu0 0.0
        %1149 = vmatpush.msra.mxu0 0.0
        %1150 = vmatpush.msra.mxu0 0.0
        %1151 = vmatpush.msra.mxu0 0.0
        %1152 = vmatpush.msra.mxu0 %v1129
        %1153 = vmatpush.msra.mxu0 %v1127
        %1154 = vmatmul.f32.gmra.mxu0 %v1133
        %v1155 = vpop.f32.mrf.mxu0
        %v1156 = vadd.f32 0.0, %v1155
        %1157 = vmatmul.f32.gmra.mxu0 %v1136
        %v1158 = vpop.f32.mrf.mxu0
        %v1159 = vadd.f32 0.0, %v1158
        %1160 = vdwg.mxu0
        %1163 = vrot.lane.b32.xlu0 %v1156, 96
        %v1164 = vpop.permute.xlu0 %1163
        %1165 = vrot.lane.b32.xlu0 %v1159, 96
        %v1166 = vpop.permute.xlu0 %1165
        %vm1169 = vcmask 1048320
        %1170 = vst.msk [vmem:[#allocation2] sm:$0xff] %vm1169, %v1164
        %1171 = vst.msk [vmem:[#allocation2 + $0x8] sm:$0xff] %vm1169, %v1166
        %v1172 = vld [vmem:[#allocation2] sm:$0xff]
        %v1173 = vld [vmem:[#allocation2 + $0x8] sm:$0xff]
        %v1174 = vld [vmem:[#allocation11] sm:$0xff]
        %v1175 = vld [vmem:[#allocation11 + $0x8] sm:$0xff]
        %v1176 = vld [vmem:[#allocation11 + $0x10] sm:$0xff]
        %v1177 = vld [vmem:[#allocation11 + $0x18] sm:$0xff]
        %v1178 = vld [vmem:[#allocation11 + $0x20] sm:$0xff]
        %v1179 = vld [vmem:[#allocation11 + $0x28] sm:$0xff]
        %v1180 = vld [vmem:[#allocation11 + $0x30] sm:$0xff]
        %v1181 = vld [vmem:[#allocation11 + $0x38] sm:$0xff]
        %v1182 = vld [vmem:[#allocation11 + $0x40] sm:$0xff]
        %v1183 = vld [vmem:[#allocation11 + $0x48] sm:$0xff]
        %v1184 = vld [vmem:[#allocation11 + $0x50] sm:$0xff]
        %v1185 = vld [vmem:[#allocation11 + $0x58] sm:$0xff]
        %v1186 = vld [vmem:[#allocation11 + $0x60] sm:$0xff]
        %v1187 = vld [vmem:[#allocation11 + $0x68] sm:$0xff]
        %v1188 = vld [vmem:[#allocation11 + $0x70] sm:$0xff]
        %v1189 = vld [vmem:[#allocation11 + $0x78] sm:$0xff]
        %v1190 = vld [vmem:[#allocation12] sm:$0x1]
        %v1192 = vperm.slane %v1190, 0
        %1194 = vmatpush.msra.mxu0 %v1189
        %1195 = vmatpush.msra.mxu0 %v1188
        %1196 = vmatpush.msra.mxu0 %v1187
        %1197 = vmatpush.msra.mxu0 %v1186
        %1198 = vmatpush.msra.mxu0 %v1185
        %1199 = vmatpush.msra.mxu0 %v1184
        %1200 = vmatpush.msra.mxu0 %v1183
        %1201 = vmatpush.msra.mxu0 %v1182
        %1202 = vmatpush.msra.mxu0 %v1181
        %1203 = vmatpush.msra.mxu0 %v1180
        %1204 = vmatpush.msra.mxu0 %v1179
        %1205 = vmatpush.msra.mxu0 %v1178
        %1206 = vmatpush.msra.mxu0 %v1177
        %1207 = vmatpush.msra.mxu0 %v1176
        %1208 = vmatpush.msra.mxu0 %v1175
        %1209 = vmatpush.msra.mxu0 %v1174
        %1210 = vmatmul.f32.gmra.mxu0 %v1172
        %v1211 = vpop.f32.mrf.mxu0
        %v1212 = vadd.f32 %v1192, %v1211
        %1213 = vmatmul.f32.gmra.mxu0 %v1173
        %v1214 = vpop.f32.mrf.mxu0
        %v1215 = vadd.f32 %v1192, %v1214
        %1216 = vdwg.mxu0
        %v1217 = vadd.f32 %v571, %v1212
        %v1218 = vadd.f32 %v572, %v1215
        %v1219 = vld [vmem:[%s7] sm:$0x1]
        %v1220 = vld [vmem:[%s8] sm:$0x1]
        %1221 = vadd.xlane.f32.xlu0 %v1217
        %v1222 = vpop.xlane.xlu0 %1221
        %1223 = vadd.xlane.f32.xlu0 %v1218
        %v1224 = vpop.xlane.xlu0 %1223
        %v1225 = vmul.f32 %v1222, %v585
        %v1226 = vmul.f32 %v1224, %v585
        %v1227 = vsub.f32 %v1217, %v1225
        %v1228 = vsub.f32 %v1218, %v1226
        %v1229 = vmul.f32 %v1227, %v1227
        %v1230 = vmul.f32 %v1228, %v1228
        %1231 = vadd.xlane.f32.xlu0 %v1229
        %v1232 = vpop.xlane.xlu0 %1231
        %1233 = vadd.xlane.f32.xlu0 %v1230
        %v1234 = vpop.xlane.xlu0 %1233
        %v1235 = vmul.f32 %v1232, %v585
        %v1236 = vmul.f32 %v1234, %v585
        %v1237 = vadd.f32 %v1235, 1e-05
        %v1238 = vadd.f32 %v1236, 1e-05
        %v1239 = vrsqrt.pop %v1237
        %v1240 = vmul.f32 %v1239, %v1237
        %v1241 = vmul.f32 %v1240, %v1239
        %v1242 = vmul.f32 0.5, %v1241
        %v1243 = vsub.f32 1.5, %v1242
        %v1244 = vmul.f32 %v1239, %v1243
        %vm1245 = vweird.f32 %v1237
        %vm1246 = vweird.f32 %v1239
        %vm1247 = vmor %vm1245, %vm1246
        %v1248 = vsel %vm1247, %v1239, %v1244
        %v1249 = vrsqrt.pop %v1238
        %v1250 = vmul.f32 %v1249, %v1238
        %v1251 = vmul.f32 %v1250, %v1249
        %v1252 = vmul.f32 0.5, %v1251
        %v1253 = vsub.f32 1.5, %v1252
        %v1254 = vmul.f32 %v1249, %v1253
        %vm1255 = vweird.f32 %v1238
        %vm1256 = vweird.f32 %v1249
        %vm1257 = vmor %vm1255, %vm1256
        %v1258 = vsel %vm1257, %v1249, %v1254
        %v1259 = vmul.f32 %v1227, %v1248
        %v1260 = vmul.f32 %v1228, %v1258
        %v1262 = vperm.slane %v1219, 0
        %v1264 = vmul.f32 %v1259, %v1262
        %v1265 = vmul.f32 %v1260, %v1262
        %v1267 = vperm.slane %v1220, 0
        %v1269 = vadd.f32 %v1264, %v1267
        %v1270 = vadd.f32 %v1265, %v1267
        %v1271 = vld [vmem:[#allocation14] sm:$0xff]
        %v1272 = vld [vmem:[#allocation14 + $0x8] sm:$0xff]
        %v1273 = vld [vmem:[#allocation14 + $0x10] sm:$0xff]
        %v1274 = vld [vmem:[#allocation14 + $0x18] sm:$0xff]
        %v1275 = vld [vmem:[#allocation14 + $0x20] sm:$0xff]
        %v1276 = vld [vmem:[#allocation14 + $0x28] sm:$0xff]
        %v1277 = vld [vmem:[#allocation14 + $0x30] sm:$0xff]
        %v1278 = vld [vmem:[#allocation14 + $0x38] sm:$0xff]
        %v1279 = vld [vmem:[#allocation14 + $0x40] sm:$0xff]
        %v1280 = vld [vmem:[#allocation14 + $0x48] sm:$0xff]
        %v1281 = vld [vmem:[#allocation14 + $0x50] sm:$0xff]
        %v1282 = vld [vmem:[#allocation14 + $0x58] sm:$0xff]
        %v1283 = vld [vmem:[#allocation14 + $0x60] sm:$0xff]
        %v1284 = vld [vmem:[#allocation14 + $0x68] sm:$0xff]
        %v1285 = vld [vmem:[#allocation14 + $0x70] sm:$0xff]
        %v1286 = vld [vmem:[#allocation14 + $0x78] sm:$0xff]
        %v1287 = vld [vmem:[#allocation14 + $0x80] sm:$0xff]
        %v1288 = vld [vmem:[#allocation14 + $0x88] sm:$0xff]
        %v1289 = vld [vmem:[#allocation14 + $0x90] sm:$0xff]
        %v1290 = vld [vmem:[#allocation14 + $0x98] sm:$0xff]
        %v1291 = vld [vmem:[#allocation14 + $0xa0] sm:$0xff]
        %v1292 = vld [vmem:[#allocation14 + $0xa8] sm:$0xff]
        %v1293 = vld [vmem:[#allocation14 + $0xb0] sm:$0xff]
        %v1294 = vld [vmem:[#allocation14 + $0xb8] sm:$0xff]
        %v1295 = vld [vmem:[#allocation14 + $0xc0] sm:$0xff]
        %v1296 = vld [vmem:[#allocation14 + $0xc8] sm:$0xff]
        %v1297 = vld [vmem:[#allocation14 + $0xd0] sm:$0xff]
        %v1298 = vld [vmem:[#allocation14 + $0xd8] sm:$0xff]
        %v1299 = vld [vmem:[#allocation14 + $0xe0] sm:$0xff]
        %v1300 = vld [vmem:[#allocation14 + $0xe8] sm:$0xff]
        %v1301 = vld [vmem:[#allocation14 + $0xf0] sm:$0xff]
        %v1302 = vld [vmem:[#allocation14 + $0xf8] sm:$0xff]
        %v1303 = vld [vmem:[%s10] sm:$0x3]
        %v1304 = vld [vmem:[#allocation15] sm:$0xff]
        %v1305 = vld [vmem:[#allocation15 + $0x8] sm:$0xff]
        %v1306 = vld [vmem:[#allocation15 + $0x10] sm:$0xff]
        %v1307 = vld [vmem:[#allocation15 + $0x18] sm:$0xff]
        %v1308 = vld [vmem:[#allocation15 + $0x20] sm:$0xff]
        %v1309 = vld [vmem:[#allocation15 + $0x28] sm:$0xff]
        %v1310 = vld [vmem:[#allocation15 + $0x30] sm:$0xff]
        %v1311 = vld [vmem:[#allocation15 + $0x38] sm:$0xff]
        %v1312 = vld [vmem:[#allocation15 + $0x40] sm:$0xff]
        %v1313 = vld [vmem:[#allocation15 + $0x48] sm:$0xff]
        %v1314 = vld [vmem:[#allocation15 + $0x50] sm:$0xff]
        %v1315 = vld [vmem:[#allocation15 + $0x58] sm:$0xff]
        %v1316 = vld [vmem:[#allocation15 + $0x60] sm:$0xff]
        %v1317 = vld [vmem:[#allocation15 + $0x68] sm:$0xff]
        %v1318 = vld [vmem:[#allocation15 + $0x70] sm:$0xff]
        %v1319 = vld [vmem:[#allocation15 + $0x78] sm:$0xff]
        %v1320 = vld [vmem:[#allocation15 + $0x80] sm:$0xff]
        %v1321 = vld [vmem:[#allocation15 + $0x88] sm:$0xff]
        %v1322 = vld [vmem:[#allocation15 + $0x90] sm:$0xff]
        %v1323 = vld [vmem:[#allocation15 + $0x98] sm:$0xff]
        %v1324 = vld [vmem:[#allocation15 + $0xa0] sm:$0xff]
        %v1325 = vld [vmem:[#allocation15 + $0xa8] sm:$0xff]
        %v1326 = vld [vmem:[#allocation15 + $0xb0] sm:$0xff]
        %v1327 = vld [vmem:[#allocation15 + $0xb8] sm:$0xff]
        %v1328 = vld [vmem:[#allocation15 + $0xc0] sm:$0xff]
        %v1329 = vld [vmem:[#allocation15 + $0xc8] sm:$0xff]
        %v1330 = vld [vmem:[#allocation15 + $0xd0] sm:$0xff]
        %v1331 = vld [vmem:[#allocation15 + $0xd8] sm:$0xff]
        %v1332 = vld [vmem:[#allocation15 + $0xe0] sm:$0xff]
        %v1333 = vld [vmem:[#allocation15 + $0xe8] sm:$0xff]
        %v1334 = vld [vmem:[#allocation15 + $0xf0] sm:$0xff]
        %v1335 = vld [vmem:[#allocation15 + $0xf8] sm:$0xff]
        %v1337 = vperm.slane %v1303, 0
        %v1338 = vperm.slane %v1303, 1
        %1341 = vmatpush.msra.mxu0 %v1301
        %1342 = vmatpush.msra.mxu0 %v1299
        %1343 = vmatpush.msra.mxu0 %v1297
        %1344 = vmatpush.msra.mxu0 %v1295
        %1345 = vmatpush.msra.mxu0 %v1293
        %1346 = vmatpush.msra.mxu0 %v1291
        %1347 = vmatpush.msra.mxu0 %v1289
        %1348 = vmatpush.msra.mxu0 %v1287
        %1349 = vmatpush.msra.mxu0 %v1285
        %1350 = vmatpush.msra.mxu0 %v1283
        %1351 = vmatpush.msra.mxu0 %v1281
        %1352 = vmatpush.msra.mxu0 %v1279
        %1353 = vmatpush.msra.mxu0 %v1277
        %1354 = vmatpush.msra.mxu0 %v1275
        %1355 = vmatpush.msra.mxu0 %v1273
        %1356 = vmatpush.msra.mxu0 %v1271
        %1357 = vmatmul.f32.gmra.mxu0 %v1269
        %v1358 = vpop.f32.mrf.mxu0
        %v1359 = vadd.f32 %v1337, %v1358
        %1360 = vmatmul.f32.gmra.mxu0 %v1270
        %v1361 = vpop.f32.mrf.mxu0
        %v1362 = vadd.f32 %v1337, %v1361
        %1363 = vdwg.mxu0
        %1364 = vmatpush.msra.mxu0 %v1302
        %1365 = vmatpush.msra.mxu0 %v1300
        %1366 = vmatpush.msra.mxu0 %v1298
        %1367 = vmatpush.msra.mxu0 %v1296
        %1368 = vmatpush.msra.mxu0 %v1294
        %1369 = vmatpush.msra.mxu0 %v1292
        %1370 = vmatpush.msra.mxu0 %v1290
        %1371 = vmatpush.msra.mxu0 %v1288
        %1372 = vmatpush.msra.mxu0 %v1286
        %1373 = vmatpush.msra.mxu0 %v1284
        %1374 = vmatpush.msra.mxu0 %v1282
        %1375 = vmatpush.msra.mxu0 %v1280
        %1376 = vmatpush.msra.mxu0 %v1278
        %1377 = vmatpush.msra.mxu0 %v1276
        %1378 = vmatpush.msra.mxu0 %v1274
        %1379 = vmatpush.msra.mxu0 %v1272
        %1380 = vmatmul.f32.gmra.mxu0 %v1269
        %v1381 = vpop.f32.mrf.mxu0
        %v1382 = vadd.f32 %v1338, %v1381
        %1383 = vmatmul.f32.gmra.mxu0 %v1270
        %v1384 = vpop.f32.mrf.mxu0
        %v1385 = vadd.f32 %v1338, %v1384
        %1386 = vdwg.mxu0
        %v1387 = vmul.f32 %v1359, 0.5
        %v1388 = vmul.f32 %v1382, 0.5
        %v1389 = vmul.f32 %v1362, 0.5
        %v1390 = vmul.f32 %v1385, 0.5
        %v1391 = vmul.f32 %v1359, 0.70710677
        %v1392 = vmul.f32 %v1382, 0.70710677
        %v1393 = vmul.f32 %v1362, 0.70710677
        %v1394 = vmul.f32 %v1385, 0.70710677
        %v1395 = vmul.f32 %v1391, %v1391
        %v1396 = vmin.f32 16.0, %v1395
        %v1397 = vmul.f32 %v1396, 2.1237322e-06
        %v1398 = vadd.f32 %v1397, 0.00028619796
        %v1399 = vmul.f32 %v1396, %v1398
        %v1400 = vadd.f32 %v1399, 0.0036580483
        %v1401 = vmul.f32 %v1396, %v1400
        %v1402 = vadd.f32 %v1401, 0.05243302
        %v1403 = vmul.f32 %v1396, %v1402
        %v1404 = vadd.f32 %v1403, 0.18741608
        %v1405 = vmul.f32 %v1396, %v1404
        %v1406 = vadd.f32 %v1405, 1.1283791
        %v1407 = vmul.f32 %v1391, %v1406
        %v1408 = vmul.f32 %v1396, 3.8918573e-05
        %v1409 = vadd.f32 %v1408, 0.001143296
        %v1410 = vmul.f32 %v1396, %v1409
        %v1411 = vadd.f32 %v1410, 0.014752088
        %v1412 = vmul.f32 %v1396, %v1411
        %v1413 = vadd.f32 %v1412, 0.112945676
        %v1414 = vmul.f32 %v1396, %v1413
        %v1415 = vadd.f32 %v1414, 0.4994258
        %v1416 = vmul.f32 %v1396, %v1415
        %v1417 = vadd.f32 %v1416, 1.0
        %v1418 = vrcp.pop %v1417
        %v1419 = vmul.f32 %v1417, %v1418
        %v1420 = vsub.f32 1.0, %v1419
        %v1421 = vmul.f32 %v1418, %v1420
        %v1422 = vadd.f32 %v1418, %v1421
        %vm1423 = vweird.f32 %v1417
        %vm1424 = vweird.f32 %v1418
        %vm1425 = vmor %vm1423, %vm1424
        %v1426 = vsel %vm1425, %v1418, %v1422
        %v1427 = vand.u32 2147483647, %v1417
        %vm1428 = vcmp.eq.f32.partialorder %v1427, 8.507059e+37
        %v1429 = vand.u32 %v1417, 2147483648
        %v1430 = vor.u32 1.1754944e-38, %v1429
        %v1431 = vsel %vm1428, %v1430, %v1426
        %v1432 = vmul.f32 %v1407, %v1431
        %v1433 = vmin.f32 %v1432, 1.0
        %v1434 = vmax.f32 %v1433, -1.0
        %v1435 = vmul.f32 %v1392, %v1392
        %v1436 = vmin.f32 16.0, %v1435
        %v1437 = vmul.f32 %v1436, 2.1237322e-06
        %v1438 = vadd.f32 %v1437, 0.00028619796
        %v1439 = vmul.f32 %v1436, %v1438
        %v1440 = vadd.f32 %v1439, 0.0036580483
        %v1441 = vmul.f32 %v1436, %v1440
        %v1442 = vadd.f32 %v1441, 0.05243302
        %v1443 = vmul.f32 %v1436, %v1442
        %v1444 = vadd.f32 %v1443, 0.18741608
        %v1445 = vmul.f32 %v1436, %v1444
        %v1446 = vadd.f32 %v1445, 1.1283791
        %v1447 = vmul.f32 %v1392, %v1446
        %v1448 = vmul.f32 %v1436, 3.8918573e-05
        %v1449 = vadd.f32 %v1448, 0.001143296
        %v1450 = vmul.f32 %v1436, %v1449
        %v1451 = vadd.f32 %v1450, 0.014752088
        %v1452 = vmul.f32 %v1436, %v1451
        %v1453 = vadd.f32 %v1452, 0.112945676
        %v1454 = vmul.f32 %v1436, %v1453
        %v1455 = vadd.f32 %v1454, 0.4994258
        %v1456 = vmul.f32 %v1436, %v1455
        %v1457 = vadd.f32 %v1456, 1.0
        %v1458 = vrcp.pop %v1457
        %v1459 = vmul.f32 %v1457, %v1458
        %v1460 = vsub.f32 1.0, %v1459
        %v1461 = vmul.f32 %v1458, %v1460
        %v1462 = vadd.f32 %v1458, %v1461
        %vm1463 = vweird.f32 %v1457
        %vm1464 = vweird.f32 %v1458
        %vm1465 = vmor %vm1463, %vm1464
        %v1466 = vsel %vm1465, %v1458, %v1462
        %v1467 = vand.u32 2147483647, %v1457
        %vm1468 = vcmp.eq.f32.partialorder %v1467, 8.507059e+37
        %v1469 = vand.u32 %v1457, 2147483648
        %v1470 = vor.u32 1.1754944e-38, %v1469
        %v1471 = vsel %vm1468, %v1470, %v1466
        %v1472 = vmul.f32 %v1447, %v1471
        %v1473 = vmin.f32 %v1472, 1.0
        %v1474 = vmax.f32 %v1473, -1.0
        %v1475 = vmul.f32 %v1393, %v1393
        %v1476 = vmin.f32 16.0, %v1475
        %v1477 = vmul.f32 %v1476, 2.1237322e-06
        %v1478 = vadd.f32 %v1477, 0.00028619796
        %v1479 = vmul.f32 %v1476, %v1478
        %v1480 = vadd.f32 %v1479, 0.0036580483
        %v1481 = vmul.f32 %v1476, %v1480
        %v1482 = vadd.f32 %v1481, 0.05243302
        %v1483 = vmul.f32 %v1476, %v1482
        %v1484 = vadd.f32 %v1483, 0.18741608
        %v1485 = vmul.f32 %v1476, %v1484
        %v1486 = vadd.f32 %v1485, 1.1283791
        %v1487 = vmul.f32 %v1393, %v1486
        %v1488 = vmul.f32 %v1476, 3.8918573e-05
        %v1489 = vadd.f32 %v1488, 0.001143296
        %v1490 = vmul.f32 %v1476, %v1489
        %v1491 = vadd.f32 %v1490, 0.014752088
        %v1492 = vmul.f32 %v1476, %v1491
        %v1493 = vadd.f32 %v1492, 0.112945676
        %v1494 = vmul.f32 %v1476, %v1493
        %v1495 = vadd.f32 %v1494, 0.4994258
        %v1496 = vmul.f32 %v1476, %v1495
        %v1497 = vadd.f32 %v1496, 1.0
        %v1498 = vrcp.pop %v1497
        %v1499 = vmul.f32 %v1497, %v1498
        %v1500 = vsub.f32 1.0, %v1499
        %v1501 = vmul.f32 %v1498, %v1500
        %v1502 = vadd.f32 %v1498, %v1501
        %vm1503 = vweird.f32 %v1497
        %vm1504 = vweird.f32 %v1498
        %vm1505 = vmor %vm1503, %vm1504
        %v1506 = vsel %vm1505, %v1498, %v1502
        %v1507 = vand.u32 2147483647, %v1497
        %vm1508 = vcmp.eq.f32.partialorder %v1507, 8.507059e+37
        %v1509 = vand.u32 %v1497, 2147483648
        %v1510 = vor.u32 1.1754944e-38, %v1509
        %v1511 = vsel %vm1508, %v1510, %v1506
        %v1512 = vmul.f32 %v1487, %v1511
        %v1513 = vmin.f32 %v1512, 1.0
        %v1514 = vmax.f32 %v1513, -1.0
        %v1515 = vmul.f32 %v1394, %v1394
        %v1516 = vmin.f32 16.0, %v1515
        %v1517 = vmul.f32 %v1516, 2.1237322e-06
        %v1518 = vadd.f32 %v1517, 0.00028619796
        %v1519 = vmul.f32 %v1516, %v1518
        %v1520 = vadd.f32 %v1519, 0.0036580483
        %v1521 = vmul.f32 %v1516, %v1520
        %v1522 = vadd.f32 %v1521, 0.05243302
        %v1523 = vmul.f32 %v1516, %v1522
        %v1524 = vadd.f32 %v1523, 0.18741608
        %v1525 = vmul.f32 %v1516, %v1524
        %v1526 = vadd.f32 %v1525, 1.1283791
        %v1527 = vmul.f32 %v1394, %v1526
        %v1528 = vmul.f32 %v1516, 3.8918573e-05
        %v1529 = vadd.f32 %v1528, 0.001143296
        %v1530 = vmul.f32 %v1516, %v1529
        %v1531 = vadd.f32 %v1530, 0.014752088
        %v1532 = vmul.f32 %v1516, %v1531
        %v1533 = vadd.f32 %v1532, 0.112945676
        %v1534 = vmul.f32 %v1516, %v1533
        %v1535 = vadd.f32 %v1534, 0.4994258
        %v1536 = vmul.f32 %v1516, %v1535
        %v1537 = vadd.f32 %v1536, 1.0
        %v1538 = vrcp.pop %v1537
        %v1539 = vmul.f32 %v1537, %v1538
        %v1540 = vsub.f32 1.0, %v1539
        %v1541 = vmul.f32 %v1538, %v1540
        %v1542 = vadd.f32 %v1538, %v1541
        %vm1543 = vweird.f32 %v1537
        %vm1544 = vweird.f32 %v1538
        %vm1545 = vmor %vm1543, %vm1544
        %v1546 = vsel %vm1545, %v1538, %v1542
        %v1547 = vand.u32 2147483647, %v1537
        %vm1548 = vcmp.eq.f32.partialorder %v1547, 8.507059e+37
        %v1549 = vand.u32 %v1537, 2147483648
        %v1550 = vor.u32 1.1754944e-38, %v1549
        %v1551 = vsel %vm1548, %v1550, %v1546
        %v1552 = vmul.f32 %v1527, %v1551
        %v1553 = vmin.f32 %v1552, 1.0
        %v1554 = vmax.f32 %v1553, -1.0
        %v1555 = vadd.f32 %v1434, 1.0
        %v1556 = vadd.f32 %v1474, 1.0
        %v1557 = vadd.f32 %v1514, 1.0
        %v1558 = vadd.f32 %v1554, 1.0
        %v1559 = vmul.f32 %v1387, %v1555
        %v1560 = vmul.f32 %v1388, %v1556
        %v1561 = vmul.f32 %v1389, %v1557
        %v1562 = vmul.f32 %v1390, %v1558
        %v1563 = vld [vmem:[%s12] sm:$0x1]
        %v1565 = vperm.slane %v1563, 0
        %1567 = vmatpush.msra.mxu0 %v1319
        %1568 = vmatpush.msra.mxu0 %v1318
        %1569 = vmatpush.msra.mxu0 %v1317
        %1570 = vmatpush.msra.mxu0 %v1316
        %1571 = vmatpush.msra.mxu0 %v1315
        %1572 = vmatpush.msra.mxu0 %v1314
        %1573 = vmatpush.msra.mxu0 %v1313
        %1574 = vmatpush.msra.mxu0 %v1312
        %1575 = vmatpush.msra.mxu0 %v1311
        %1576 = vmatpush.msra.mxu0 %v1310
        %1577 = vmatpush.msra.mxu0 %v1309
        %1578 = vmatpush.msra.mxu0 %v1308
        %1579 = vmatpush.msra.mxu0 %v1307
        %1580 = vmatpush.msra.mxu0 %v1306
        %1581 = vmatpush.msra.mxu0 %v1305
        %1582 = vmatpush.msra.mxu0 %v1304
        %1583 = vmatmul.f32.gmra.mxu0 %v1559
        %v1584 = vpop.f32.mrf.mxu0
        %v1585 = vadd.f32 %v1565, %v1584
        %1586 = vmatmul.f32.gmra.mxu0 %v1561
        %v1587 = vpop.f32.mrf.mxu0
        %v1588 = vadd.f32 %v1565, %v1587
        %1589 = vdwg.mxu0
        %1590 = vmatpush.msra.mxu0 %v1335
        %1591 = vmatpush.msra.mxu0 %v1334
        %1592 = vmatpush.msra.mxu0 %v1333
        %1593 = vmatpush.msra.mxu0 %v1332
        %1594 = vmatpush.msra.mxu0 %v1331
        %1595 = vmatpush.msra.mxu0 %v1330
        %1596 = vmatpush.msra.mxu0 %v1329
        %1597 = vmatpush.msra.mxu0 %v1328
        %1598 = vmatpush.msra.mxu0 %v1327
        %1599 = vmatpush.msra.mxu0 %v1326
        %1600 = vmatpush.msra.mxu0 %v1325
        %1601 = vmatpush.msra.mxu0 %v1324
        %1602 = vmatpush.msra.mxu0 %v1323
        %1603 = vmatpush.msra.mxu0 %v1322
        %1604 = vmatpush.msra.mxu0 %v1321
        %1605 = vmatpush.msra.mxu0 %v1320
        %1606 = vmatmul.f32.gmra.mxu0 %v1560
        %v1607 = vpop.f32.mrf.mxu0
        %v1608 = vadd.f32 %v1585, %v1607
        %1609 = vmatmul.f32.gmra.mxu0 %v1562
        %v1610 = vpop.f32.mrf.mxu0
        %v1611 = vadd.f32 %v1588, %v1610
        %1612 = vdwg.mxu0
        %v1613 = vadd.f32 %v1217, %v1608
        %v1614 = vadd.f32 %v1218, %v1611
        %1615 = vst [vmem:[%s570] sm:$0xff] %v1613
        %1616 = vst [vmem:[%s570 + $0x8] sm:$0xff] %v1614
        %s1617 = sand.u32 %s320, 1
        %s1618 = scalar_lea.sflag [#allocation5], %s1617
        %s1619 = sand.u32 %s320, 1
        %s1620 = smul.addr %s1619, 16
        %s1621 = scalar_lea.vmem [#allocation17], %s1620
        // Predicated region
        $region105: #{tpu_custom_call.1} parent=71 // pred_check
          %p1622 = pneg %p330
        $region106: #{tpu_custom_call.1} parent=71 // pred_check_branch
          %1624 = sbr.rel (%p1622) target = $region108
        $region107: #{tpu_custom_call.1} parent=71 // pred_region
          %1626 = vsyncadd %s1618, 0
          %s1627 = smul.addr %s34, 2
          %s1628 = smul.addr %s1627, 8
          %s1629 = scalar_lea.hbm %s13, %s1628
          %s1630 = sshll.u32 %s1621, 4
          %s1631 = int_to_ptr.vmem [resolvable:$true] %s1630
          %s1632 = sshll.u32 %s1629, 4
          %s1633 = int_to_ptr.hbm [resolvable:$true] %s1632
          %1638 = dma.vmem_to_hbm [thread:$0]  %s1631, 256, %s1633, %s1618, 128, 128, 8
        $region108: #{tpu_custom_call.1} parent=71 // pred_fallthru
          _
      $region72: #{tpu_custom_call.1} parent=5 // pred_fallthru
        _
      %p1639 = scmp.le.s32.totalorder 2, %s29
      // Predicated region
      $region109: #{tpu_custom_call.1} parent=5 // pred_check
        %p1640 = pneg %p1639
      $region110: #{tpu_custom_call.1} parent=5 // pred_check_branch
        %1642 = sbr.rel (%p1640) target = $region112
      $region111: #{tpu_custom_call.1} parent=5 // pred_region
        %s1643 = ssub.s32 %s29, 2
        // Predicated region
        $region113: #{tpu_custom_call.1} parent=111 // pred_check
          %p1644 = pneg %p336
        $region114: #{tpu_custom_call.1} parent=111 // pred_check_branch
          %1646 = sbr.rel (%p1644) target = $region116
        $region115: #{tpu_custom_call.1} parent=111 // pred_region
          %s1647 = sand.u32 %s321, 1
          %s1648 = scalar_lea.sflag [#allocation5], %s1647
          %s1649 = sand.u32 %s321, 1
          %s1650 = smul.addr %s1649, 16
          %s1651 = scalar_lea.vmem [#allocation17], %s1650
          %1653 = dma.done %s1648, 256
        $region116: #{tpu_custom_call.1} parent=111 // pred_fallthru
          _
      $region112: #{tpu_custom_call.1} parent=5 // pred_fallthru
        _
    $region6: #{tpu_custom_call.1} parent=1 // loop_footer
      %s33 = sadd.s32 1, %s29
    $region7: #{tpu_custom_call.1} parent=1 // loop_footer_branch
      %28 = sbr.rel target = $region3
    $region8: #{tpu_custom_call.1} parent=1 // loop_exit
      _
    %1654 = vsyncpa [#allocation4], 1
    %s1655 = scalar_lea.sflag [#allocation4], 1
    %1656 = vsyncpa %s1655, 1
    %1657 = vsyncpa [#allocation7], 1
    %1658 = vsyncpa [#allocation10], 1
    %1659 = vsyncpa [#allocation13], 1
    %1660 = vsyncpa [#allocation16], 1
    %1661 = vsyncpa [#allocation5], 1
    %s1662 = scalar_lea.sflag [#allocation5], 1
    %1663 = vsyncpa %s1662, 1

</llo_original>
